<compile_context>
chip_gen: v6e
topology: v6e:2x2x1
jax: 0.10.0
libtpu: 0.0.40
codegen_flags: <defaults>
</compile_context>

<pallas_src>
import functools
import math

import jax
import jax.numpy as jnp
from jax.experimental import pallas as pl
from jax.experimental.pallas import tpu as pltpu


# ----------------------------------------------------------------------------- helpers

def _round_up(x, m):
    return (x + m - 1) // m * m


def _pick_tile(d):
    """Largest MXU-friendly tile that exactly divides d (else the full dim)."""
    for t in (512, 384, 256, 128):
        if d % t == 0:
            return t
    return d


def _gelu(x):
    # tanh-approximate GELU (EUP tanh); |diff| vs exact-erf GELU ~1e-3.
    c = math.sqrt(2.0 / math.pi)
    return 0.5 * x * (1.0 + jnp.tanh(c * (x + 0.044715 * x * x * x)))


# ----------------------------------------------------------------------------- kernels

def _conv_kernel(x_ref, w_ref, sc_ref, sh_ref, o_ref, acc_ref, *, Wp, pad, KW, taps, act):
    """Fused conv / matmul.  grid = (N tiles, K tiles).  The KH*KW taps are statically
    unrolled as row-shifted matmuls over the flattened padded activation (no im2col).
    Epilogue: y = act(acc * scale + shift), stored as o_ref.dtype (bf16 / f32)."""
    k = pl.program_id(1)

    @pl.when(k == 0)
    def _init():
        acc_ref[...] = jnp.zeros_like(acc_ref)

    rows = acc_ref.shape[0]
    guard = pad * Wp + pad
    contrib = None
    for t in range(taps):                              # static unroll over conv taps
        kh, kw = t // KW, t % KW
        off = guard + (kh - pad) * Wp + (kw - pad)     # static row offset, >= 0
        a = x_ref[off:off + rows, :]
        d = jnp.dot(a, w_ref[t], preferred_element_type=jnp.float32)
        contrib = d if contrib is None else contrib + d
    acc_ref[...] += contrib

    @pl.when(k == pl.num_programs(1) - 1)
    def _fin():
        y = acc_ref[...] * sc_ref[...] + sh_ref[...]
        if act == "relu":
            y = jnp.maximum(y, 0.0)
        elif act == "gelu":
            y = _gelu(y)
        o_ref[...] = y.astype(o_ref.dtype)


def _add_kernel(a_ref, b_ref, o_ref, *, act):
    y = a_ref[...].astype(jnp.float32) + b_ref[...].astype(jnp.float32)
    if act == "relu":
        y = jnp.maximum(y, 0.0)
    elif act == "gelu":
        y = _gelu(y)
    o_ref[...] = y.astype(o_ref.dtype)


def _layernorm_kernel(x_ref, g_ref, b_ref, o_ref):
    x = x_ref[...].astype(jnp.float32)
    mu = jnp.mean(x, axis=-1, keepdims=True)
    var = jnp.mean(jnp.square(x - mu), axis=-1, keepdims=True)
    y = (x - mu) * jax.lax.rsqrt(var + 1e-5) * g_ref[...] + b_ref[...]
    o_ref[...] = y.astype(o_ref.dtype)


def _gn_kernel(x_ref, g_ref, b_ref, o_ref, *, act):
    # GroupNorm(1, C): per-sample statistics over (H*W, C); optional fused GELU.
    x = x_ref[...].astype(jnp.float32)
    mu = jnp.mean(x, axis=(1, 2), keepdims=True)
    var = jnp.mean(jnp.square(x - mu), axis=(1, 2), keepdims=True)
    y = (x - mu) * jax.lax.rsqrt(var + 1e-5) * g_ref[...] + b_ref[...]
    if act == "gelu":
        y = _gelu(y)
    o_ref[...] = y.astype(o_ref.dtype)


def _max9_kernel(*refs):
    o_ref = refs[-1]
    y = refs[0][...]
    for r in refs[1:-1]:
        y = jnp.maximum(y, r[...])
    o_ref[...] = y


def _bilerp_kernel(p00, p01, p10, p11, w00, w01, w10, w11, o_ref):
    y = (p00[...].astype(jnp.float32) * w00[...] +
         p01[...].astype(jnp.float32) * w01[...] +
         p10[...].astype(jnp.float32) * w10[...] +
         p11[...].astype(jnp.float32) * w11[...])
    o_ref[...] = y.astype(o_ref.dtype)


def _mha_kernel(q_ref, k_ref, v_ref, o_ref, *, scale):
    q = q_ref[...].astype(jnp.float32) * scale
    k = k_ref[...].astype(jnp.float32)
    s = jax.lax.dot_general(q, k, (((1,), (1,)), ((), ())),
                            preferred_element_type=jnp.float32)
    m = jnp.max(s, axis=-1, keepdims=True)
    e = jnp.exp(s - m)
    p = e * pl.reciprocal(jnp.sum(e, axis=-1, keepdims=True), approx=True)
    o = jnp.dot(p.astype(v_ref.dtype), v_ref[...], preferred_element_type=jnp.float32)
    o_ref[...] = o.astype(o_ref.dtype)


# ----------------------------------------------------------------------------- launchers

def _conv_matmul(a_flat, w3, scale, shift, *, Wp=1, pad=0, KW=1, act=None,
                 out_dtype=jnp.bfloat16):
    """a_flat: (M, K) bf16 rows (spatially padded & flattened when pad > 0);
       w3: (taps, K, N) bf16.  Returns (M, N) out_dtype.  For pad > 0 the rows cover the
       whole padded grid; the caller slices the valid interior afterwards."""
    M, K = a_flat.shape
    taps, _, N = w3.shape
    guard = pad * Wp + pad
    tn = _pick_tile(N)
    tk = _pick_tile(K)
    a2 = jnp.pad(a_flat, ((guard, guard), (0, 0))) if guard else a_flat
    sc = (jnp.ones((1, N), jnp.float32) if scale is None
          else scale.reshape(1, N).astype(jnp.float32))
    sh = (jnp.zeros((1, N), jnp.float32) if shift is None
          else shift.reshape(1, N).astype(jnp.float32))
    kernel = functools.partial(_conv_kernel, Wp=Wp, pad=pad, KW=KW, taps=taps, act=act)
    return pl.pallas_call(
        kernel,
        out_shape=jax.ShapeDtypeStruct((M, N), out_dtype),
        grid=(N // tn, K // tk),
        in_specs=[pl.BlockSpec((M + 2 * guard, tk), lambda n, k: (0, k)),
                  pl.BlockSpec((taps, tk, tn), lambda n, k: (0, k, n)),
                  pl.BlockSpec((1, tn), lambda n, k: (0, n)),
                  pl.BlockSpec((1, tn), lambda n, k: (0, n))],
        out_specs=pl.BlockSpec((M, tn), lambda n, k: (0, n)),
        scratch_shapes=[pltpu.VMEM((M, tn), jnp.float32)],
        compiler_params=pltpu.CompilerParams(
            dimension_semantics=("parallel", "arbitrary")),
        cost_estimate=pl.CostEstimate(
            flops=2 * M * N * K * taps,
            transcendentals=(M * N if act == "gelu" else 0),
            bytes_accessed=2 * ((M + 2 * guard) * K * (N // tn) + taps * K * N) + M * N * 2),
    )(a2, w3, sc, sh)


def _pick_rows(R, cols, nbuf, budget=4 << 20):
    """Row-block that exactly divides R (8-aligned unless it equals R), within a
    per-buffer-set VMEM budget; prefer >= 2 grid steps for large R (megacore)."""
    limit = max(8, budget // max(1, cols * 4 * nbuf))
    divs = [d for d in range(1, R + 1) if R % d == 0 and (d == R or d % 8 == 0)]
    cap = min(limit, R // 2) if R >= 256 else limit
    for bound in (cap, limit):
        ok = [d for d in divs if d <= bound]
        if ok:
            return max(ok)
    return 0


def _row_call(kernel, args, out_cols, out_dtype):
    """Row-tiled elementwise / normalization launcher over 2D (rows, cols) operands.
    Single-row args are broadcast (constant (1, cols) block)."""
    R = max(a.shape[0] for a in args)
    tr = _pick_rows(R, out_cols, len(args) + 1)
    if tr == 0:                      # fallback (not hit at these shapes): pad the rows
        tr = 512
        Rp = _round_up(R, tr)
    else:
        Rp = R
    in_specs, ops = [], []
    for a in args:
        if a.shape[0] == 1 and R > 1:
            ops.append(a)
            in_specs.append(pl.BlockSpec((1, a.shape[1]), lambda r: (0, 0)))
        else:
            ops.append(jnp.pad(a, ((0, Rp - a.shape[0]), (0, 0))) if Rp != a.shape[0] else a)
            in_specs.append(pl.BlockSpec((tr, a.shape[1]), lambda r: (r, 0)))
    out = pl.pallas_call(
        kernel,
        out_shape=jax.ShapeDtypeStruct((Rp, out_cols), out_dtype),
        grid=(Rp // tr,),
        in_specs=in_specs,
        out_specs=pl.BlockSpec((tr, out_cols), lambda r: (r, 0)),
        compiler_params=pltpu.CompilerParams(dimension_semantics=("parallel",)),
    )(*ops)
    return out if Rp == R else out[:R]


# ----------------------------------------------------------------------------- wrappers

@functools.partial(jax.jit, static_argnames=("stride", "pad", "act", "out_dtype"))
def conv2d(x, w3, scale=None, shift=None, *, stride=1, pad=0, act=None,
           out_dtype=jnp.bfloat16):
    """x: (B,H,W,Cin) bf16 NHWC; w3: (k*k, Cin, Cout) bf16.  Fused BN/bias + act."""
    B, H, W, Cin = x.shape
    taps, _, Cout = w3.shape
    k = int(round(math.sqrt(taps)))
    Ho = (H + 2 * pad - k) // stride + 1
    Wo = (W + 2 * pad - k) // stride + 1

    if k == 1:                                            # 1x1 conv (stride via XLA slice)
        xs = x[:, ::stride, ::stride, :][:, :Ho, :Wo, :] if stride > 1 else x
        y = _conv_matmul(xs.reshape(B * Ho * Wo, Cin), w3, scale, shift,
                         act=act, out_dtype=out_dtype)
        return y.reshape(B, Ho, Wo, Cout)

    if stride == 1 and 2 * pad == k - 1:                  # 'same' KxK conv: in-kernel taps
        Hp, Wpd = H + 2 * pad, W + 2 * pad
        xp = jnp.pad(x, ((0, 0), (pad, pad), (pad, pad), (0, 0)))
        y = _conv_matmul(xp.reshape(B * Hp * Wpd, Cin), w3, scale, shift,
                         Wp=Wpd, pad=pad, KW=k, act=act, out_dtype=out_dtype)
        return y.reshape(B, Hp, Wpd, Cout)[:, pad:pad + Ho, pad:pad + Wo, :]

    # Strided KxK conv (stem 7x7/s2 + the three 3x3/s2 bottleneck convs): tiny inputs.
    # TODO(synk): fold strided taps in-kernel as well; kept as a small explicit im2col.
    xp = jnp.pad(x, ((0, 0), (pad, pad), (pad, pad), (0, 0)))
    cols = []
    for kh in range(k):
        for kw in range(k):
            cols.append(xp[:, kh:kh + stride * (Ho - 1) + 1:stride,
                           kw:kw + stride * (Wo - 1) + 1:stride, :])
    a = jnp.concatenate(cols, axis=-1).reshape(B * Ho * Wo, taps * Cin)
    y = _conv_matmul(a, w3.reshape(1, taps * Cin, Cout), scale, shift,
                     act=act, out_dtype=out_dtype)
    return y.reshape(B, Ho, Wo, Cout)


@functools.partial(jax.jit, static_argnames=("act", "out_dtype"))
def linear(x, w, b=None, act=None, out_dtype=jnp.bfloat16):
    lead, K = x.shape[:-1], x.shape[-1]
    y = _conv_matmul(x.reshape(-1, K), w.reshape(1, K, -1), None, b,
                     act=act, out_dtype=out_dtype)
    return y.reshape(lead + (w.shape[-1],))


@functools.partial(jax.jit, static_argnames=("act",))
def add(a, b, act=None):
    shape = a.shape
    C = shape[-1]
    R = a.size // C
    f = 1
    while (C * f) % 128 != 0 and f < 16 and R % (2 * f) == 0:
        f *= 2                                    # lane-dense repack for narrow channels
    y = _row_call(functools.partial(_add_kernel, act=act),
                  [a.reshape(R // f, C * f), b.reshape(R // f, C * f)], C * f, a.dtype)
    return y.reshape(shape)


@jax.jit
def layer_norm(x, g, b):
    C = x.shape[-1]
    y = _row_call(_layernorm_kernel,
                  [x.reshape(-1, C), g.reshape(1, C).astype(jnp.float32),
                   b.reshape(1, C).astype(jnp.float32)], C, x.dtype)
    return y.reshape(x.shape)


@functools.partial(jax.jit, static_argnames=("act",))
def group_norm1(x, g, b, act=None):
    B, H, W, C = x.shape
    HW = H * W
    out = pl.pallas_call(
        functools.partial(_gn_kernel, act=act),
        out_shape=jax.ShapeDtypeStruct((B, HW, C), x.dtype),
        grid=(B,),
        in_specs=[pl.BlockSpec((1, HW, C), lambda i: (i, 0, 0)),
                  pl.BlockSpec((1, 1, C), lambda i: (0, 0, 0)),
                  pl.BlockSpec((1, 1, C), lambda i: (0, 0, 0))],
        out_specs=pl.BlockSpec((1, HW, C), lambda i: (i, 0, 0)),
        compiler_params=pltpu.CompilerParams(dimension_semantics=("parallel",)),
    )(x.reshape(B, HW, C), g.reshape(1, 1, C).astype(jnp.float32),
      b.reshape(1, 1, C).astype(jnp.float32))
    return out.reshape(B, H, W, C)


@jax.jit
def maxpool_3x3_s2_p1(x):
    B, H, W, C = x.shape
    neg = float(jnp.finfo(x.dtype).min)
    xp = jnp.pad(x, ((0, 0), (1, 1), (1, 1), (0, 0)), constant_values=neg)
    Ho = (H - 1) // 2 + 1
    Wo = (W - 1) // 2 + 1
    R = B * Ho * Wo
    f = 1
    while (C * f) % 128 != 0 and f < 16 and R % (2 * f) == 0:
        f *= 2
    slices = []
    for kh in range(3):
        for kw in range(3):
            slices.append(xp[:, kh:kh + 2 * (Ho - 1) + 1:2,
                             kw:kw + 2 * (Wo - 1) + 1:2, :].reshape(R // f, C * f))
    y = _row_call(_max9_kernel, slices, C * f, x.dtype)
    # TODO(synk): a fully in-kernel 9-tap maxpool would cut the 9x slice reads; kept as-is
    #             because it runs once on a tiny (B,16,16,64) tensor.
    return y.reshape(B, Ho, Wo, C)


@jax.jit
def bilinear_up2(x):
    """nn.Upsample(scale_factor=2, mode='bilinear', align_corners=True)."""
    B, H, W, C = x.shape
    Ho, Wo = 2 * H, 2 * W

    def axis_grid(n_in, n_out):
        if n_in == 1:
            z = jnp.zeros((n_out,), jnp.int32)
            return z, z, jnp.zeros((n_out,), jnp.float32)
        src = jnp.arange(n_out, dtype=jnp.float32) * ((n_in - 1) / (n_out - 1))
        i0 = jnp.clip(jnp.floor(src).astype(jnp.int32), 0, n_in - 1)
        i1 = jnp.clip(i0 + 1, 0, n_in - 1)
        return i0, i1, src - i0.astype(jnp.float32)

    i0, i1, fh = axis_grid(H, Ho)
    j0, j1, fw = axis_grid(W, Wo)
    x0 = jnp.take(x, i0, axis=1)
    x1 = jnp.take(x, i1, axis=1)
    p00 = jnp.take(x0, j0, axis=2)
    p01 = jnp.take(x0, j1, axis=2)
    p10 = jnp.take(x1, j0, axis=2)
    p11 = jnp.take(x1, j1, axis=2)
    wh = fh.reshape(Ho, 1, 1)
    ww = fw.reshape(1, Wo, 1)
    w00 = (1.0 - wh) * (1.0 - ww)
    w01 = (1.0 - wh) * ww
    w10 = wh * (1.0 - ww)
    w11 = wh * ww
    corner_spec = pl.BlockSpec((None, Ho, Wo, C), lambda b: (b, 0, 0, 0))
    weight_spec = pl.BlockSpec((Ho, Wo, 1), lambda b: (0, 0, 0))
    # TODO(synk): the 4 corner gathers are still XLA ops; a single-read in-kernel gather
    #             would cut upsample read traffic ~4x for large maps.
    return pl.pallas_call(
        _bilerp_kernel,
        out_shape=jax.ShapeDtypeStruct((B, Ho, Wo, C), x.dtype),
        grid=(B,),
        in_specs=[corner_spec] * 4 + [weight_spec] * 4,
        out_specs=corner_spec,
        compiler_params=pltpu.CompilerParams(dimension_semantics=("parallel",)),
    )(p00, p01, p10, p11, w00, w01, w10, w11)


@jax.jit
def mha_core(q, k, v):
    # q,k,v: (B*heads, L, hd) — one softmax-attention kernel, gridded over batch*heads.
    BH, L, hd = q.shape
    scale = 1.0 / math.sqrt(hd)
    spec = pl.BlockSpec((None, L, hd), lambda b: (b, 0, 0))
    return pl.pallas_call(
        functools.partial(_mha_kernel, scale=scale),
        out_shape=jax.ShapeDtypeStruct((BH, L, hd), q.dtype),
        grid=(BH,),
        in_specs=[spec] * 3,
        out_specs=spec,
        compiler_params=pltpu.CompilerParams(dimension_semantics=("parallel",)),
    )(q, k, v)


# ----------------------------------------------------------------------------- model pieces

def bottleneck(x, blk):
    s = blk["stride"]
    h = conv2d(x, blk["w1"], blk["bn1"][0], blk["bn1"][1], act="relu")
    h = conv2d(h, blk["w2"], blk["bn2"][0], blk["bn2"][1], stride=s, pad=1, act="relu")
    h = conv2d(h, blk["w3"], blk["bn3"][0], blk["bn3"][1])
    if "wd" in blk:
        idn = conv2d(x, blk["wd"], blk["bnd"][0], blk["bnd"][1], stride=s)
    else:
        idn = x
    return add(h, idn, act="relu")


def run_layer(x, blocks):
    for blk in blocks:
        x = bottleneck(x, blk)
    return x


def double_conv(x, dc, residual):
    h = conv2d(x, dc["w1"], pad=1)
    h = group_norm1(h, dc["n1"][0], dc["n1"][1], act="gelu")
    h = conv2d(h, dc["w2"], pad=1)
    h = group_norm1(h, dc["n2"][0], dc["n2"][1])
    if residual:
        return add(x, h, act="gelu")       # F.gelu(x + double_conv(x))
    return h


def up_block(x, skip, up):
    x = bilinear_up2(x)
    x = jnp.concatenate([skip, x], axis=-1)        # torch.cat([skip_x, x], dim=1)
    x = double_conv(x, up["dc1"], residual=True)
    x = double_conv(x, up["dc2"], residual=False)
    # TODO(synk): emb_layer(t) branch skipped — forward is invoked with t=None.
    return x


def self_attention(x, p, num_heads=4):
    B, H, W, C = x.shape
    L = H * W
    hd = C // num_heads
    xs = x.reshape(B, L, C)
    x_ln = layer_norm(xs, p["ln1"][0], p["ln1"][1])
    qkv = linear(x_ln, p["qkv"][0], p["qkv"][1])
    q, k, v = jnp.split(qkv, 3, axis=-1)

    def split_heads(t):
        return t.reshape(B, L, num_heads, hd).transpose(0, 2, 1, 3).reshape(B * num_heads, L, hd)

    attn = mha_core(split_heads(q), split_heads(k), split_heads(v))
    attn = attn.reshape(B, num_heads, L, hd).transpose(0, 2, 1, 3).reshape(B, L, C)
    attn = linear(attn, p["proj"][0], p["proj"][1])
    y = add(attn, xs)
    z = layer_norm(y, p["ln2"][0], p["ln2"][1])
    z = linear(z, p["ff1"][0], p["ff1"][1], act="gelu")
    z = linear(z, p["ff2"][0], p["ff2"][1])
    out = add(z, y)
    return out.reshape(B, H, W, C)


def unet_resnet50enc_forward(x_nchw, params, t=None):
    x = jnp.transpose(x_nchw, (0, 2, 3, 1)).astype(jnp.bfloat16)     # NCHW -> NHWC bf16
    x = conv2d(x, params["conv1"], params["bn1"][0], params["bn1"][1],
               stride=2, pad=3, act="relu")
    x_enc = x                                                        # skip for up4
    x0 = maxpool_3x3_s2_p1(x)
    x1 = run_layer(x0, params["layer1"])
    x2 = run_layer(x1, params["layer2"])
    x3 = run_layer(x2, params["layer3"])
    x4 = run_layer(x3, params["layer4"])
    att = self_attention(x4, params["att"])
    xo = up_block(att, x3, params["up1"])
    xo = up_block(xo, x2, params["up2"])
    xo = up_block(xo, x1, params["up3"])
    xo = up_block(xo, x_enc, params["up4"])
    xo = bilinear_up2(xo)                                            # up5
    out = conv2d(xo, params["outc"][0], shift=params["outc"][1],
                 out_dtype=jnp.float32)                              # 1x1 conv + bias
    return jnp.transpose(out, (0, 3, 1, 2))                          # NHWC -> NCHW


# ----------------------------------------------------------------------------- parameters

class _KeyGen:
    def __init__(self, seed):
        self.key = jax.random.PRNGKey(seed)

    def __call__(self):
        self.key, sub = jax.random.split(self.key)
        return sub


def _conv_w(kg, k, cin, cout):
    w = jax.random.normal(kg(), (k * k, cin, cout), jnp.float32) / math.sqrt(k * k * cin)
    return w.astype(jnp.bfloat16)           # weights pre-cast once (no per-call cast)


def _bn_p(kg, c):
    g = 1.0 + 0.1 * jax.random.normal(kg(), (c,), jnp.float32)
    b = 0.1 * jax.random.normal(kg(), (c,), jnp.float32)
    mean = 0.1 * jax.random.normal(kg(), (c,), jnp.float32)
    var = 1.0 + 0.1 * jnp.abs(jax.random.normal(kg(), (c,), jnp.float32))
    scale = g / jnp.sqrt(var + 1e-5)
    shift = b - mean * scale
    return scale, shift


def _affine_p(kg, c):
    return (1.0 + 0.1 * jax.random.normal(kg(), (c,), jnp.float32),
            0.1 * jax.random.normal(kg(), (c,), jnp.float32))


def _lin_p(kg, cin, cout):
    w = (jax.random.normal(kg(), (cin, cout), jnp.float32) / math.sqrt(cin)).astype(jnp.bfloat16)
    b = 0.1 * jax.random.normal(kg(), (cout,), jnp.float32)
    return w, b


def _dc_params(kg, cin, cout, mid=None):
    mid = cout if mid is None else mid
    return {"w1": _conv_w(kg, 3, cin, mid), "n1": _affine_p(kg, mid),
            "w2": _conv_w(kg, 3, mid, cout), "n2": _affine_p(kg, cout)}


def _up_params(kg, cin, cout):
    return {"dc1": _dc_params(kg, cin, cin),
            "dc2": _dc_params(kg, cin, cout, cin // 2)}


def build_params(seed=1):
    kg = _KeyGen(seed)
    p = {"conv1": _conv_w(kg, 7, 3, 64), "bn1": _bn_p(kg, 64)}

    def res_layer(cin, mid, nblocks, stride):
        blocks = []
        for i in range(nblocks):
            s = stride if i == 0 else 1
            ci = cin if i == 0 else mid * 4
            blk = {"w1": _conv_w(kg, 1, ci, mid), "bn1": _bn_p(kg, mid),
                   "w2": _conv_w(kg, 3, mid, mid), "bn2": _bn_p(kg, mid),
                   "w3": _conv_w(kg, 1, mid, mid * 4), "bn3": _bn_p(kg, mid * 4),
                   "stride": s}
            if i == 0:
                blk["wd"] = _conv_w(kg, 1, ci, mid * 4)
                blk["bnd"] = _bn_p(kg, mid * 4)
            blocks.append(blk)
        return blocks

    p["layer1"] = res_layer(64, 64, 3, 1)
    p["layer2"] = res_layer(256, 128, 4, 2)
    p["layer3"] = res_layer(512, 256, 6, 2)
    p["layer4"] = res_layer(1024, 512, 3, 2)
    C = 2048
    p["att"] = {"ln1": _affine_p(kg, C), "qkv": _lin_p(kg, C, 3 * C),
                "proj": _lin_p(kg, C, C), "ln2": _affine_p(kg, C),
                "ff1": _lin_p(kg, C, C), "ff2": _lin_p(kg, C, C)}
    p["up1"] = _up_params(kg, 2048 + 1024, 1024)
    p["up2"] = _up_params(kg, 1024 + 512, 512)
    p["up3"] = _up_params(kg, 512 + 256, 256)
    p["up4"] = _up_params(kg, 256 + 64, 64)
    p["outc"] = (_conv_w(kg, 1, 64, 3),
                 0.1 * jax.random.normal(kg(), (3,), jnp.float32))
    return p


# ----------------------------------------------------------------------------- main

if __name__ == "__main__":
    params = build_params(seed=1)
    # 32x32 is the smallest spatial size the /32 encoder + 5 upsamples support.
    x = jax.random.normal(jax.random.PRNGKey(0), (2, 3, 32, 32), jnp.float32)
    out = unet_resnet50enc_forward(x, params, t=None)
    out = jax.block_until_ready(out)
    assert out.shape == (2, 3, 32, 32), out.shape
    assert bool(jnp.all(jnp.isfinite(out)))
    print("KERNEL_OK")
</pallas_src>

<mosaic_0001>
module attributes {stable_mosaic.version = 11 : i64} {
  func.func @_conv_kernel(%arg0: i32, %arg1: i32, %arg2: memref<512x147xbf16, #tpu.memory_space<vmem>>, %arg3: memref<1x147x64xbf16, #tpu.memory_space<vmem>>, %arg4: memref<1x64xf32, #tpu.memory_space<vmem>>, %arg5: memref<1x64xf32, #tpu.memory_space<vmem>>, %arg6: memref<512x64xbf16, #tpu.memory_space<vmem>>, %arg7: memref<512x64xf32, #tpu.memory_space<vmem>>) attributes {dimension_semantics = [#tpu.dimension_semantics<parallel>, #tpu.dimension_semantics<arbitrary>], iteration_bounds = array<i64: 1, 1>, scalar_prefetch = 0 : i64, scratch_operands = 1 : i64, tpu.core_type = #tpu.core_type<tc>, window_params = [{transform_indices = @transform_0, window_bounds = array<i64: 512, 147>}, {transform_indices = @transform_1, window_bounds = array<i64: 1, 147, 64>}, {transform_indices = @transform_2, window_bounds = array<i64: 1, 64>}, {transform_indices = @transform_3, window_bounds = array<i64: 1, 64>}, {transform_indices = @transform_4, window_bounds = array<i64: 512, 64>}]} {
    %c0_i32 = arith.constant 0 : i32
    %0 = arith.cmpi eq, %arg1, %c0_i32 : i32
    %1 = arith.extui %0 : i1 to i32
    %c0_i32_0 = arith.constant 0 : i32
    %2 = arith.cmpi ne, %1, %c0_i32_0 : i32
    scf.if %2 {
      %cst_11 = arith.constant 0.000000e+00 : f32
      %13 = vector.broadcast %cst_11 : f32 to vector<512x64xf32>
      %c0_12 = arith.constant 0 : index
      %c0_13 = arith.constant 0 : index
      %14 = vector.load %arg7[%c0_12, %c0_13] : memref<512x64xf32, #tpu.memory_space<vmem>>, vector<512x64xf32>
      tpu.vector_store %arg7[%c0_12, %c0_13], %13 {strides = array<i32>} : memref<512x64xf32, #tpu.memory_space<vmem>>, vector<512x64xf32>,
    } else {
    }
    %c0 = arith.constant 0 : index
    %c0_1 = arith.constant 0 : index
    %3 = vector.load %arg2[%c0, %c0_1] : memref<512x147xbf16, #tpu.memory_space<vmem>>, vector<512x147xbf16>
    %c0_2 = arith.constant 0 : index
    %c0_3 = arith.constant 0 : index
    %c0_4 = arith.constant 0 : index
    %4 = vector.load %arg3[%c0_2, %c0_3, %c0_4] : memref<1x147x64xbf16, #tpu.memory_space<vmem>>, vector<1x147x64xbf16>
    %5 = vector.shape_cast %4 : vector<1x147x64xbf16> to vector<147x64xbf16>
    %cst = arith.constant dense<0.000000e+00> : vector<512x64xf32>
    %6 = tpu.matmul %3, %5, %cst {dimension_numbers = #tpu.dot_dimension_numbers<[1], [0], [0], [1], [0, 0, 1, 1], [], []>} : vector<512x147xbf16>, vector<147x64xbf16>, vector<512x64xf32> -> vector<512x64xf32>
    %c0_5 = arith.constant 0 : index
    %c0_6 = arith.constant 0 : index
    %7 = vector.load %arg7[%c0_5, %c0_6] : memref<512x64xf32, #tpu.memory_space<vmem>>, vector<512x64xf32>
    %8 = arith.addf %7, %6 : vector<512x64xf32>
    %c0_7 = arith.constant 0 : index
    %c0_8 = arith.constant 0 : index
    %9 = vector.load %arg7[%c0_7, %c0_8] : memref<512x64xf32, #tpu.memory_space<vmem>>, vector<512x64xf32>
    tpu.vector_store %arg7[%c0_7, %c0_8], %8 {strides = array<i32>} : memref<512x64xf32, #tpu.memory_space<vmem>>, vector<512x64xf32>,
    %c0_i32_9 = arith.constant 0 : i32
    %10 = arith.cmpi eq, %arg1, %c0_i32_9 : i32
    %11 = arith.extui %10 : i1 to i32
    %c0_i32_10 = arith.constant 0 : i32
    %12 = arith.cmpi ne, %11, %c0_i32_10 : i32
    scf.if %12 {
      %c0_11 = arith.constant 0 : index
      %c0_12 = arith.constant 0 : index
      %13 = vector.load %arg7[%c0_11, %c0_12] : memref<512x64xf32, #tpu.memory_space<vmem>>, vector<512x64xf32>
      %c0_13 = arith.constant 0 : index
      %c0_14 = arith.constant 0 : index
      %14 = vector.load %arg4[%c0_13, %c0_14] : memref<1x64xf32, #tpu.memory_space<vmem>>, vector<1x64xf32>
      %15 = vector.broadcast %14 : vector<1x64xf32> to vector<512x64xf32>
      %16 = arith.mulf %13, %15 : vector<512x64xf32>
      %c0_15 = arith.constant 0 : index
      %c0_16 = arith.constant 0 : index
      %17 = vector.load %arg5[%c0_15, %c0_16] : memref<1x64xf32, #tpu.memory_space<vmem>>, vector<1x64xf32>
      %18 = vector.broadcast %17 : vector<1x64xf32> to vector<512x64xf32>
      %19 = arith.addf %16, %18 : vector<512x64xf32>
      %cst_17 = arith.constant 0.000000e+00 : f32
      %20 = vector.broadcast %cst_17 : f32 to vector<512x64xf32>
      %21 = arith.maximumf %19, %20 : vector<512x64xf32>
      %22 = arith.truncf %21 : vector<512x64xf32> to vector<512x64xbf16>
      %c0_18 = arith.constant 0 : index
      %c0_19 = arith.constant 0 : index
      %23 = vector.load %arg6[%c0_18, %c0_19] : memref<512x64xbf16, #tpu.memory_space<vmem>>, vector<512x64xbf16>
      tpu.vector_store %arg6[%c0_18, %c0_19], %22 {strides = array<i32>} : memref<512x64xbf16, #tpu.memory_space<vmem>>, vector<512x64xbf16>,
    } else {
    }
    return
  }
  func.func @transform_0(%arg0: i32, %arg1: i32) -> (i32, i32) {
    %c0_i32 = arith.constant 0 : i32
    %c0_i32_0 = arith.constant 0 : i32
    return %c0_i32, %arg1 : i32, i32
  }
  func.func @transform_1(%arg0: i32, %arg1: i32) -> (i32, i32, i32) {
    %c0_i32 = arith.constant 0 : i32
    %c0_i32_0 = arith.constant 0 : i32
    return %c0_i32, %arg1, %arg0 : i32, i32, i32
  }
  func.func @transform_2(%arg0: i32, %arg1: i32) -> (i32, i32) {
    %c0_i32 = arith.constant 0 : i32
    %c0_i32_0 = arith.constant 0 : i32
    return %c0_i32, %arg0 : i32, i32
  }
  func.func @transform_3(%arg0: i32, %arg1: i32) -> (i32, i32) {
    %c0_i32 = arith.constant 0 : i32
    %c0_i32_0 = arith.constant 0 : i32
    return %c0_i32, %arg0 : i32, i32
  }
  func.func @transform_4(%arg0: i32, %arg1: i32) -> (i32, i32) {
    %c0_i32 = arith.constant 0 : i32
    %c0_i32_0 = arith.constant 0 : i32
    return %c0_i32, %arg0 : i32, i32
  }
}

</mosaic_0001>

<llo_original>
// kernel: conv2d.1
$region0: #{conv2d.1}
  #allocation0 [shape = 'u32[]', space=smem, size = 0x4, offset = 0x4, fixed_abs, tag = 'smem constant byte address 0x4 - core index']
  #allocation1 [shape = 'u32[144,128]{1,0:T(1,128)}', space=vmem, size = 0x12000, scoped, tag = 'internal scratch']
  #allocation2 [shape = 'f32[512,64]{1,0:T(8,128)}', space=vmem, size = 0x40000, scoped, tag = 'scratch operand']
  %s0 = inlined_call_operand.vmem [shape: bf16[512,147], index: 0, kind: input, shape index: {}]
  %s1 = inlined_call_operand.vmem [shape: bf16[1,147,64], index: 1, kind: input, shape index: {}]
  %s2 = inlined_call_operand.vmem [shape: f32[1,64], index: 2, kind: input, shape index: {}]
  %s3 = inlined_call_operand.vmem [shape: f32[1,64], index: 3, kind: input, shape index: {}]
  %s4 = inlined_call_operand.hbm [shape: bf16[512,64], index: 4, kind: output, shape index: {}]
  %s5 = sld [smem:[#allocation0]]
  $region34: #{conv2d.1} parent=0
    _
  %s7 = ssub.s32 1, %s5
  %s8 = scalar_select 0, %s7, %s5
  $region1: #{conv2d.1} parent=0
    #allocation3 [shape = 'u8[131072]{0}', space=vmem, size = 0x20000, scoped, tag = 'output window, operand 0, single buffered']
    #allocation4 [shape = 's32[1]{0}', space=sflag, size = 0x4, scoped, tag = 'scoped memory for conv2d.1']
    %9 = vsyncpa [#allocation4], 0
    // Predicated region
    $region2: #{conv2d.1} parent=1 // pred_check
      _
    $region3: #{conv2d.1} parent=1 // pred_check_branch
      %11 = sbr.rel (0) target = $region5
    $region4: #{conv2d.1} parent=1 // pred_region
      _
    $region5: #{conv2d.1} parent=1 // pred_fallthru
      _
    // Predicated region
    $region6: #{conv2d.1} parent=1 // pred_check
      _
    $region7: #{conv2d.1} parent=1 // pred_check_branch
      %13 = sbr.rel (0) target = $region9
    $region8: #{conv2d.1} parent=1 // pred_region
      _
    $region9: #{conv2d.1} parent=1 // pred_fallthru
      _
    // Predicated region
    $region10: #{conv2d.1} parent=1 // pred_check
      _
    $region11: #{conv2d.1} parent=1 // pred_check_branch
      %15 = sbr.rel (0) target = $region13
    $region12: #{conv2d.1} parent=1 // pred_region
      _
    $region13: #{conv2d.1} parent=1 // pred_fallthru
      _
    // Predicated region
    $region14: #{conv2d.1} parent=1 // pred_check
      _
    $region15: #{conv2d.1} parent=1 // pred_check_branch
      %17 = sbr.rel (0) target = $region17
    $region16: #{conv2d.1} parent=1 // pred_region
      _
    $region17: #{conv2d.1} parent=1 // pred_fallthru
      _
    %p19 = scmp.eq.s32.totalorder 0, 0
    // Predicated region
    $region18: #{conv2d.1} parent=1 // pred_check
      %p20 = pneg %p19
    $region19: #{conv2d.1} parent=1 // pred_check_branch
      %22 = sbr.rel (%p20) target = $region21
    $region20: #{conv2d.1} parent=1 // pred_region
      %vm23 = vcmask 523264
      %24 = vst.msk [vmem:[#allocation2] sm:$0xff] %vm23, 0.0
      %25 = vst.msk [vmem:[#allocation2 + $0x8] sm:$0xff] %vm23, 0.0
      %26 = vst.msk [vmem:[#allocation2 + $0x10] sm:$0xff] %vm23, 0.0
      %27 = vst.msk [vmem:[#allocation2 + $0x18] sm:$0xff] %vm23, 0.0
      %28 = vst.msk [vmem:[#allocation2 + $0x20] sm:$0xff] %vm23, 0.0
      %29 = vst.msk [vmem:[#allocation2 + $0x28] sm:$0xff] %vm23, 0.0
      %30 = vst.msk [vmem:[#allocation2 + $0x30] sm:$0xff] %vm23, 0.0
      %31 = vst.msk [vmem:[#allocation2 + $0x38] sm:$0xff] %vm23, 0.0
      %32 = vst.msk [vmem:[#allocation2 + $0x40] sm:$0xff] %vm23, 0.0
      %33 = vst.msk [vmem:[#allocation2 + $0x48] sm:$0xff] %vm23, 0.0
      %34 = vst.msk [vmem:[#allocation2 + $0x50] sm:$0xff] %vm23, 0.0
      %35 = vst.msk [vmem:[#allocation2 + $0x58] sm:$0xff] %vm23, 0.0
      %36 = vst.msk [vmem:[#allocation2 + $0x60] sm:$0xff] %vm23, 0.0
      %37 = vst.msk [vmem:[#allocation2 + $0x68] sm:$0xff] %vm23, 0.0
      %38 = vst.msk [vmem:[#allocation2 + $0x70] sm:$0xff] %vm23, 0.0
      %39 = vst.msk [vmem:[#allocation2 + $0x78] sm:$0xff] %vm23, 0.0
      %40 = vst.msk [vmem:[#allocation2 + $0x80] sm:$0xff] %vm23, 0.0
      %41 = vst.msk [vmem:[#allocation2 + $0x88] sm:$0xff] %vm23, 0.0
      %42 = vst.msk [vmem:[#allocation2 + $0x90] sm:$0xff] %vm23, 0.0
      %43 = vst.msk [vmem:[#allocation2 + $0x98] sm:$0xff] %vm23, 0.0
      %44 = vst.msk [vmem:[#allocation2 + $0xa0] sm:$0xff] %vm23, 0.0
      %45 = vst.msk [vmem:[#allocation2 + $0xa8] sm:$0xff] %vm23, 0.0
      %46 = vst.msk [vmem:[#allocation2 + $0xb0] sm:$0xff] %vm23, 0.0
      %47 = vst.msk [vmem:[#allocation2 + $0xb8] sm:$0xff] %vm23, 0.0
      %48 = vst.msk [vmem:[#allocation2 + $0xc0] sm:$0xff] %vm23, 0.0
      %49 = vst.msk [vmem:[#allocation2 + $0xc8] sm:$0xff] %vm23, 0.0
      %50 = vst.msk [vmem:[#allocation2 + $0xd0] sm:$0xff] %vm23, 0.0
      %51 = vst.msk [vmem:[#allocation2 + $0xd8] sm:$0xff] %vm23, 0.0
      %52 = vst.msk [vmem:[#allocation2 + $0xe0] sm:$0xff] %vm23, 0.0
      %53 = vst.msk [vmem:[#allocation2 + $0xe8] sm:$0xff] %vm23, 0.0
      %54 = vst.msk [vmem:[#allocation2 + $0xf0] sm:$0xff] %vm23, 0.0
      %55 = vst.msk [vmem:[#allocation2 + $0xf8] sm:$0xff] %vm23, 0.0
      %56 = vst.msk [vmem:[#allocation2 + $0x100] sm:$0xff] %vm23, 0.0
      %57 = vst.msk [vmem:[#allocation2 + $0x108] sm:$0xff] %vm23, 0.0
      %58 = vst.msk [vmem:[#allocation2 + $0x110] sm:$0xff] %vm23, 0.0
      %59 = vst.msk [vmem:[#allocation2 + $0x118] sm:$0xff] %vm23, 0.0
      %60 = vst.msk [vmem:[#allocation2 + $0x120] sm:$0xff] %vm23, 0.0
      %61 = vst.msk [vmem:[#allocation2 + $0x128] sm:$0xff] %vm23, 0.0
      %62 = vst.msk [vmem:[#allocation2 + $0x130] sm:$0xff] %vm23, 0.0
      %63 = vst.msk [vmem:[#allocation2 + $0x138] sm:$0xff] %vm23, 0.0
      %64 = vst.msk [vmem:[#allocation2 + $0x140] sm:$0xff] %vm23, 0.0
      %65 = vst.msk [vmem:[#allocation2 + $0x148] sm:$0xff] %vm23, 0.0
      %66 = vst.msk [vmem:[#allocation2 + $0x150] sm:$0xff] %vm23, 0.0
      %67 = vst.msk [vmem:[#allocation2 + $0x158] sm:$0xff] %vm23, 0.0
      %68 = vst.msk [vmem:[#allocation2 + $0x160] sm:$0xff] %vm23, 0.0
      %69 = vst.msk [vmem:[#allocation2 + $0x168] sm:$0xff] %vm23, 0.0
      %70 = vst.msk [vmem:[#allocation2 + $0x170] sm:$0xff] %vm23, 0.0
      %71 = vst.msk [vmem:[#allocation2 + $0x178] sm:$0xff] %vm23, 0.0
      %72 = vst.msk [vmem:[#allocation2 + $0x180] sm:$0xff] %vm23, 0.0
      %73 = vst.msk [vmem:[#allocation2 + $0x188] sm:$0xff] %vm23, 0.0
      %74 = vst.msk [vmem:[#allocation2 + $0x190] sm:$0xff] %vm23, 0.0
      %75 = vst.msk [vmem:[#allocation2 + $0x198] sm:$0xff] %vm23, 0.0
      %76 = vst.msk [vmem:[#allocation2 + $0x1a0] sm:$0xff] %vm23, 0.0
      %77 = vst.msk [vmem:[#allocation2 + $0x1a8] sm:$0xff] %vm23, 0.0
      %78 = vst.msk [vmem:[#allocation2 + $0x1b0] sm:$0xff] %vm23, 0.0
      %79 = vst.msk [vmem:[#allocation2 + $0x1b8] sm:$0xff] %vm23, 0.0
      %80 = vst.msk [vmem:[#allocation2 + $0x1c0] sm:$0xff] %vm23, 0.0
      %81 = vst.msk [vmem:[#allocation2 + $0x1c8] sm:$0xff] %vm23, 0.0
      %82 = vst.msk [vmem:[#allocation2 + $0x1d0] sm:$0xff] %vm23, 0.0
      %83 = vst.msk [vmem:[#allocation2 + $0x1d8] sm:$0xff] %vm23, 0.0
      %84 = vst.msk [vmem:[#allocation2 + $0x1e0] sm:$0xff] %vm23, 0.0
      %85 = vst.msk [vmem:[#allocation2 + $0x1e8] sm:$0xff] %vm23, 0.0
      %86 = vst.msk [vmem:[#allocation2 + $0x1f0] sm:$0xff] %vm23, 0.0
      %87 = vst.msk [vmem:[#allocation2 + $0x1f8] sm:$0xff] %vm23, 0.0
    $region21: #{conv2d.1} parent=1 // pred_fallthru
      _
    %v88 = vld [vmem:[%s0] sm:$0xff]
    %v89 = vld [vmem:[%s0 + $0x8] sm:$0xff]
    %v90 = vld [vmem:[%s0 + $0x10] sm:$0xff]
    %v91 = vld [vmem:[%s0 + $0x18] sm:$0xff]
    %v92 = vld [vmem:[%s0 + $0x20] sm:$0xff]
    %v93 = vld [vmem:[%s0 + $0x28] sm:$0xff]
    %v94 = vld [vmem:[%s0 + $0x30] sm:$0xff]
    %v95 = vld [vmem:[%s0 + $0x38] sm:$0xff]
    %v96 = vld [vmem:[%s0 + $0x40] sm:$0xff]
    %v97 = vld [vmem:[%s0 + $0x48] sm:$0xff]
    %v98 = vld [vmem:[%s0 + $0x50] sm:$0xff]
    %v99 = vld [vmem:[%s0 + $0x58] sm:$0xff]
    %v100 = vld [vmem:[%s0 + $0x60] sm:$0xff]
    %v101 = vld [vmem:[%s0 + $0x68] sm:$0xff]
    %v102 = vld [vmem:[%s0 + $0x70] sm:$0xff]
    %v103 = vld [vmem:[%s0 + $0x78] sm:$0xff]
    %v104 = vld [vmem:[%s0 + $0x80] sm:$0xff]
    %v105 = vld [vmem:[%s0 + $0x88] sm:$0xff]
    %v106 = vld [vmem:[%s0 + $0x90] sm:$0xff]
    %v107 = vld [vmem:[%s0 + $0x98] sm:$0xff]
    %v108 = vld [vmem:[%s0 + $0xa0] sm:$0xff]
    %v109 = vld [vmem:[%s0 + $0xa8] sm:$0xff]
    %v110 = vld [vmem:[%s0 + $0xb0] sm:$0xff]
    %v111 = vld [vmem:[%s0 + $0xb8] sm:$0xff]
    %v112 = vld [vmem:[%s0 + $0xc0] sm:$0xff]
    %v113 = vld [vmem:[%s0 + $0xc8] sm:$0xff]
    %v114 = vld [vmem:[%s0 + $0xd0] sm:$0xff]
    %v115 = vld [vmem:[%s0 + $0xd8] sm:$0xff]
    %v116 = vld [vmem:[%s0 + $0xe0] sm:$0xff]
    %v117 = vld [vmem:[%s0 + $0xe8] sm:$0xff]
    %v118 = vld [vmem:[%s0 + $0xf0] sm:$0xff]
    %v119 = vld [vmem:[%s0 + $0xf8] sm:$0xff]
    %v120 = vld [vmem:[%s0 + $0x100] sm:$0xff]
    %v121 = vld [vmem:[%s0 + $0x108] sm:$0xff]
    %v122 = vld [vmem:[%s0 + $0x110] sm:$0xff]
    %v123 = vld [vmem:[%s0 + $0x118] sm:$0xff]
    %v124 = vld [vmem:[%s0 + $0x120] sm:$0xff]
    %v125 = vld [vmem:[%s0 + $0x128] sm:$0xff]
    %v126 = vld [vmem:[%s0 + $0x130] sm:$0xff]
    %v127 = vld [vmem:[%s0 + $0x138] sm:$0xff]
    %v128 = vld [vmem:[%s0 + $0x140] sm:$0xff]
    %v129 = vld [vmem:[%s0 + $0x148] sm:$0xff]
    %v130 = vld [vmem:[%s0 + $0x150] sm:$0xff]
    %v131 = vld [vmem:[%s0 + $0x158] sm:$0xff]
    %v132 = vld [vmem:[%s0 + $0x160] sm:$0xff]
    %v133 = vld [vmem:[%s0 + $0x168] sm:$0xff]
    %v134 = vld [vmem:[%s0 + $0x170] sm:$0xff]
    %v135 = vld [vmem:[%s0 + $0x178] sm:$0xff]
    %v136 = vld [vmem:[%s0 + $0x180] sm:$0xff]
    %v137 = vld [vmem:[%s0 + $0x188] sm:$0xff]
    %v138 = vld [vmem:[%s0 + $0x190] sm:$0xff]
    %v139 = vld [vmem:[%s0 + $0x198] sm:$0xff]
    %v140 = vld [vmem:[%s0 + $0x1a0] sm:$0xff]
    %v141 = vld [vmem:[%s0 + $0x1a8] sm:$0xff]
    %v142 = vld [vmem:[%s0 + $0x1b0] sm:$0xff]
    %v143 = vld [vmem:[%s0 + $0x1b8] sm:$0xff]
    %v144 = vld [vmem:[%s0 + $0x1c0] sm:$0xff]
    %v145 = vld [vmem:[%s0 + $0x1c8] sm:$0xff]
    %v146 = vld [vmem:[%s0 + $0x1d0] sm:$0xff]
    %v147 = vld [vmem:[%s0 + $0x1d8] sm:$0xff]
    %v148 = vld [vmem:[%s0 + $0x1e0] sm:$0xff]
    %v149 = vld [vmem:[%s0 + $0x1e8] sm:$0xff]
    %v150 = vld [vmem:[%s0 + $0x1f0] sm:$0xff]
    %v151 = vld [vmem:[%s0 + $0x1f8] sm:$0xff]
    %v152 = vld [vmem:[%s1] sm:$0xf]
    %v153 = vld [vmem:[%s1 + $0x4] sm:$0xf]
    %v154 = vld [vmem:[%s1 + $0x8] sm:$0xf]
    %v155 = vld [vmem:[%s1 + $0xc] sm:$0xf]
    %v156 = vld [vmem:[%s1 + $0x10] sm:$0xf]
    %v157 = vld [vmem:[%s1 + $0x14] sm:$0xf]
    %v158 = vld [vmem:[%s1 + $0x18] sm:$0xf]
    %v159 = vld [vmem:[%s1 + $0x1c] sm:$0xf]
    %v160 = vld [vmem:[%s1 + $0x20] sm:$0xf]
    %v161 = vld [vmem:[%s1 + $0x24] sm:$0xf]
    %v162 = vld [vmem:[%s1 + $0x28] sm:$0xf]
    %v163 = vld [vmem:[%s1 + $0x2c] sm:$0xf]
    %v164 = vld [vmem:[%s1 + $0x30] sm:$0xf]
    %v165 = vld [vmem:[%s1 + $0x34] sm:$0xf]
    %v166 = vld [vmem:[%s1 + $0x38] sm:$0xf]
    %v167 = vld [vmem:[%s1 + $0x3c] sm:$0xf]
    %v168 = vld [vmem:[%s1 + $0x40] sm:$0xf]
    %v169 = vld [vmem:[%s1 + $0x44] sm:$0xf]
    %v170 = vld [vmem:[%s1 + $0x48] sm:$0x3]
    %v235 = vunpack.c.l.b16 %v88
    %v236 = vunpack.c.h.b16 %v88
    %v237 = vunpack.c.l.b16 %v89
    %v238 = vunpack.c.h.b16 %v89
    %v239 = vunpack.c.l.b16 %v90
    %v240 = vunpack.c.h.b16 %v90
    %v241 = vunpack.c.l.b16 %v91
    %v242 = vunpack.c.h.b16 %v91
    %v243 = vunpack.c.l.b16 %v92
    %v244 = vunpack.c.h.b16 %v92
    %v245 = vunpack.c.l.b16 %v93
    %v246 = vunpack.c.h.b16 %v93
    %v247 = vunpack.c.l.b16 %v94
    %v248 = vunpack.c.h.b16 %v94
    %v249 = vunpack.c.l.b16 %v95
    %v250 = vunpack.c.h.b16 %v95
    %v251 = vunpack.c.l.b16 %v96
    %v252 = vunpack.c.h.b16 %v96
    %v253 = vunpack.c.l.b16 %v97
    %v254 = vunpack.c.h.b16 %v97
    %v255 = vunpack.c.l.b16 %v98
    %v256 = vunpack.c.h.b16 %v98
    %v257 = vunpack.c.l.b16 %v99
    %v258 = vunpack.c.h.b16 %v99
    %v259 = vunpack.c.l.b16 %v100
    %v260 = vunpack.c.h.b16 %v100
    %v261 = vunpack.c.l.b16 %v101
    %v262 = vunpack.c.h.b16 %v101
    %v263 = vunpack.c.l.b16 %v102
    %v264 = vunpack.c.h.b16 %v102
    %v265 = vunpack.c.l.b16 %v103
    %v266 = vunpack.c.h.b16 %v103
    %v267 = vunpack.c.l.b16 %v104
    %v268 = vunpack.c.h.b16 %v104
    %v269 = vunpack.c.l.b16 %v105
    %v270 = vunpack.c.h.b16 %v105
    %v271 = vunpack.c.l.b16 %v106
    %v272 = vunpack.c.h.b16 %v106
    %v273 = vunpack.c.l.b16 %v107
    %v274 = vunpack.c.h.b16 %v107
    %v275 = vunpack.c.l.b16 %v108
    %v276 = vunpack.c.h.b16 %v108
    %v277 = vunpack.c.l.b16 %v109
    %v278 = vunpack.c.h.b16 %v109
    %v279 = vunpack.c.l.b16 %v110
    %v280 = vunpack.c.h.b16 %v110
    %v281 = vunpack.c.l.b16 %v111
    %v282 = vunpack.c.h.b16 %v111
    %v283 = vunpack.c.l.b16 %v112
    %v284 = vunpack.c.h.b16 %v112
    %v285 = vunpack.c.l.b16 %v113
    %v286 = vunpack.c.h.b16 %v113
    %v287 = vunpack.c.l.b16 %v114
    %v288 = vunpack.c.h.b16 %v114
    %v289 = vunpack.c.l.b16 %v115
    %v290 = vunpack.c.h.b16 %v115
    %v291 = vunpack.c.l.b16 %v116
    %v292 = vunpack.c.h.b16 %v116
    %v293 = vunpack.c.l.b16 %v117
    %v294 = vunpack.c.h.b16 %v117
    %v295 = vunpack.c.l.b16 %v118
    %v296 = vunpack.c.h.b16 %v118
    %v297 = vunpack.c.l.b16 %v119
    %v298 = vunpack.c.h.b16 %v119
    %v299 = vunpack.c.l.b16 %v120
    %v300 = vunpack.c.h.b16 %v120
    %v301 = vunpack.c.l.b16 %v121
    %v302 = vunpack.c.h.b16 %v121
    %v303 = vunpack.c.l.b16 %v122
    %v304 = vunpack.c.h.b16 %v122
    %v305 = vunpack.c.l.b16 %v123
    %v306 = vunpack.c.h.b16 %v123
    %v307 = vunpack.c.l.b16 %v124
    %v308 = vunpack.c.h.b16 %v124
    %v309 = vunpack.c.l.b16 %v125
    %v310 = vunpack.c.h.b16 %v125
    %v311 = vunpack.c.l.b16 %v126
    %v312 = vunpack.c.h.b16 %v126
    %v313 = vunpack.c.l.b16 %v127
    %v314 = vunpack.c.h.b16 %v127
    %v315 = vunpack.c.l.b16 %v128
    %v316 = vunpack.c.h.b16 %v128
    %v317 = vunpack.c.l.b16 %v129
    %v318 = vunpack.c.h.b16 %v129
    %v319 = vunpack.c.l.b16 %v130
    %v320 = vunpack.c.h.b16 %v130
    %v321 = vunpack.c.l.b16 %v131
    %v322 = vunpack.c.h.b16 %v131
    %v323 = vunpack.c.l.b16 %v132
    %v324 = vunpack.c.h.b16 %v132
    %v325 = vunpack.c.l.b16 %v133
    %v326 = vunpack.c.h.b16 %v133
    %v327 = vunpack.c.l.b16 %v134
    %v328 = vunpack.c.h.b16 %v134
    %v329 = vunpack.c.l.b16 %v135
    %v330 = vunpack.c.h.b16 %v135
    %v331 = vunpack.c.l.b16 %v136
    %v332 = vunpack.c.h.b16 %v136
    %v333 = vunpack.c.l.b16 %v137
    %v334 = vunpack.c.h.b16 %v137
    %v335 = vunpack.c.l.b16 %v138
    %v336 = vunpack.c.h.b16 %v138
    %v337 = vunpack.c.l.b16 %v139
    %v338 = vunpack.c.h.b16 %v139
    %v339 = vunpack.c.l.b16 %v140
    %v340 = vunpack.c.h.b16 %v140
    %v341 = vunpack.c.l.b16 %v141
    %v342 = vunpack.c.h.b16 %v141
    %v343 = vunpack.c.l.b16 %v142
    %v344 = vunpack.c.h.b16 %v142
    %v345 = vunpack.c.l.b16 %v143
    %v346 = vunpack.c.h.b16 %v143
    %v347 = vunpack.c.l.b16 %v144
    %v348 = vunpack.c.h.b16 %v144
    %v349 = vunpack.c.l.b16 %v145
    %v350 = vunpack.c.h.b16 %v145
    %v351 = vunpack.c.l.b16 %v146
    %v352 = vunpack.c.h.b16 %v146
    %v353 = vunpack.c.l.b16 %v147
    %v354 = vunpack.c.h.b16 %v147
    %v355 = vunpack.c.l.b16 %v148
    %v356 = vunpack.c.h.b16 %v148
    %v357 = vunpack.c.l.b16 %v149
    %v358 = vunpack.c.h.b16 %v149
    %v359 = vunpack.c.l.b16 %v150
    %v360 = vunpack.c.h.b16 %v150
    %v361 = vunpack.c.l.b16 %v151
    %v362 = vunpack.c.h.b16 %v151
    %v363 = vpack.c.b16 %v237, %v235
    %v364 = vpack.c.b16 %v238, %v236
    %v365 = vpack.c.b16 %v241, %v239
    %v366 = vpack.c.b16 %v242, %v240
    %v367 = vpack.c.b16 %v245, %v243
    %v368 = vpack.c.b16 %v246, %v244
    %v369 = vpack.c.b16 %v249, %v247
    %v370 = vpack.c.b16 %v250, %v248
    %v371 = vpack.c.b16 %v253, %v251
    %v372 = vpack.c.b16 %v254, %v252
    %v373 = vpack.c.b16 %v257, %v255
    %v374 = vpack.c.b16 %v258, %v256
    %v375 = vpack.c.b16 %v261, %v259
    %v376 = vpack.c.b16 %v262, %v260
    %v377 = vpack.c.b16 %v265, %v263
    %v378 = vpack.c.b16 %v266, %v264
    %v379 = vpack.c.b16 %v269, %v267
    %v380 = vpack.c.b16 %v270, %v268
    %v381 = vpack.c.b16 %v273, %v271
    %v382 = vpack.c.b16 %v274, %v272
    %v383 = vpack.c.b16 %v277, %v275
    %v384 = vpack.c.b16 %v278, %v276
    %v385 = vpack.c.b16 %v281, %v279
    %v386 = vpack.c.b16 %v282, %v280
    %v387 = vpack.c.b16 %v285, %v283
    %v388 = vpack.c.b16 %v286, %v284
    %v389 = vpack.c.b16 %v289, %v287
    %v390 = vpack.c.b16 %v290, %v288
    %v391 = vpack.c.b16 %v293, %v291
    %v392 = vpack.c.b16 %v294, %v292
    %v393 = vpack.c.b16 %v297, %v295
    %v394 = vpack.c.b16 %v298, %v296
    %v395 = vpack.c.b16 %v301, %v299
    %v396 = vpack.c.b16 %v302, %v300
    %v397 = vpack.c.b16 %v305, %v303
    %v398 = vpack.c.b16 %v306, %v304
    %v399 = vpack.c.b16 %v309, %v307
    %v400 = vpack.c.b16 %v310, %v308
    %v401 = vpack.c.b16 %v313, %v311
    %v402 = vpack.c.b16 %v314, %v312
    %v403 = vpack.c.b16 %v317, %v315
    %v404 = vpack.c.b16 %v318, %v316
    %v405 = vpack.c.b16 %v321, %v319
    %v406 = vpack.c.b16 %v322, %v320
    %v407 = vpack.c.b16 %v325, %v323
    %v408 = vpack.c.b16 %v326, %v324
    %v409 = vpack.c.b16 %v329, %v327
    %v410 = vpack.c.b16 %v330, %v328
    %v411 = vpack.c.b16 %v333, %v331
    %v412 = vpack.c.b16 %v334, %v332
    %v413 = vpack.c.b16 %v337, %v335
    %v414 = vpack.c.b16 %v338, %v336
    %v415 = vpack.c.b16 %v341, %v339
    %v416 = vpack.c.b16 %v342, %v340
    %v417 = vpack.c.b16 %v345, %v343
    %v418 = vpack.c.b16 %v346, %v344
    %v419 = vpack.c.b16 %v349, %v347
    %v420 = vpack.c.b16 %v350, %v348
    %v421 = vpack.c.b16 %v353, %v351
    %v422 = vpack.c.b16 %v354, %v352
    %v423 = vpack.c.b16 %v357, %v355
    %v424 = vpack.c.b16 %v358, %v356
    %v425 = vpack.c.b16 %v361, %v359
    %v426 = vpack.c.b16 %v362, %v360
    %v478 = vunpack.c.l.b16 %v152
    %v479 = vunpack.c.l.b16 %v153
    %v480 = vunpack.c.l.b16 %v154
    %v481 = vunpack.c.l.b16 %v155
    %v482 = vunpack.c.l.b16 %v156
    %v483 = vunpack.c.l.b16 %v157
    %v484 = vunpack.c.l.b16 %v158
    %v485 = vunpack.c.l.b16 %v159
    %v486 = vunpack.c.l.b16 %v160
    %v487 = vunpack.c.l.b16 %v161
    %v488 = vunpack.c.l.b16 %v162
    %v489 = vunpack.c.l.b16 %v163
    %v490 = vunpack.c.l.b16 %v164
    %v491 = vunpack.c.l.b16 %v165
    %v492 = vunpack.c.l.b16 %v166
    %v493 = vunpack.c.l.b16 %v167
    %v494 = vunpack.c.l.b16 %v168
    %v495 = vunpack.c.l.b16 %v169
    %v496 = vunpack.c.l.b16 %v170
    %v497 = vpack.c.b16 %v479, %v478
    %v498 = vpack.c.b16 %v481, %v480
    %v499 = vpack.c.b16 %v483, %v482
    %v500 = vpack.c.b16 %v485, %v484
    %v501 = vpack.c.b16 %v487, %v486
    %v502 = vpack.c.b16 %v489, %v488
    %v503 = vpack.c.b16 %v491, %v490
    %v504 = vpack.c.b16 %v493, %v492
    %v505 = vpack.c.b16 %v495, %v494
    %v506 = vpack.c.b16 %v496, %v496
    %vm516 = vcmask 154624
    %v518 = vsel %vm516, %v364, 0
    %v521 = vsel %vm516, %v366, 0
    %v524 = vsel %vm516, %v368, 0
    %v527 = vsel %vm516, %v370, 0
    %v530 = vsel %vm516, %v372, 0
    %v533 = vsel %vm516, %v374, 0
    %v536 = vsel %vm516, %v376, 0
    %v539 = vsel %vm516, %v378, 0
    %v542 = vsel %vm516, %v380, 0
    %v545 = vsel %vm516, %v382, 0
    %v548 = vsel %vm516, %v384, 0
    %v551 = vsel %vm516, %v386, 0
    %v554 = vsel %vm516, %v388, 0
    %v557 = vsel %vm516, %v390, 0
    %v560 = vsel %vm516, %v392, 0
    %v563 = vsel %vm516, %v394, 0
    %v566 = vsel %vm516, %v396, 0
    %v569 = vsel %vm516, %v398, 0
    %v572 = vsel %vm516, %v400, 0
    %v575 = vsel %vm516, %v402, 0
    %v578 = vsel %vm516, %v404, 0
    %v581 = vsel %vm516, %v406, 0
    %v584 = vsel %vm516, %v408, 0
    %v587 = vsel %vm516, %v410, 0
    %v590 = vsel %vm516, %v412, 0
    %v593 = vsel %vm516, %v414, 0
    %v596 = vsel %vm516, %v416, 0
    %v599 = vsel %vm516, %v418, 0
    %v602 = vsel %vm516, %v420, 0
    %v605 = vsel %vm516, %v422, 0
    %v608 = vsel %vm516, %v424, 0
    %v611 = vsel %vm516, %v426, 0
    %vm613 = vcmask 1040384
    %vm614 = vcmask 1041408
    %v615 = vsel %vm613, 4294967295, 65535
    %v616 = vsel %vm614, %v615, 0
    %v618 = vand.u32 %v506, %v616
    %620 = vmatprep.subr.bf16.mxu0 0
    %621 = vmatpush1.bf16.msra.mxu0 %v504
    %622 = vmatprep.subr.bf16.mxu0 0
    %623 = vmatpush1.bf16.msra.mxu0 %v503
    %624 = vmatprep.subr.bf16.mxu0 0
    %625 = vmatpush1.bf16.msra.mxu0 %v502
    %626 = vmatprep.subr.bf16.mxu0 0
    %627 = vmatpush1.bf16.msra.mxu0 %v501
    %628 = vmatprep.subr.bf16.mxu0 0
    %629 = vmatpush1.bf16.msra.mxu0 %v500
    %630 = vmatprep.subr.bf16.mxu0 0
    %631 = vmatpush1.bf16.msra.mxu0 %v499
    %632 = vmatprep.subr.bf16.mxu0 0
    %633 = vmatpush1.bf16.msra.mxu0 %v498
    %634 = vmatprep.subr.bf16.mxu0 0
    %635 = vmatpush1.bf16.msra.mxu0 %v497
    %636 = vmatprep.subr.bf16.mxu0 0
    %637 = vmatpush2.bf16.msra.mxu0 0
    %638 = vmatprep.subr.bf16.mxu0 0
    %639 = vmatpush2.bf16.msra.mxu0 0
    %640 = vmatprep.subr.bf16.mxu0 0
    %641 = vmatpush2.bf16.msra.mxu0 0
    %642 = vmatprep.subr.bf16.mxu0 0
    %643 = vmatpush2.bf16.msra.mxu0 0
    %644 = vmatprep.subr.bf16.mxu0 0
    %645 = vmatpush2.bf16.msra.mxu0 0
    %646 = vmatprep.subr.bf16.mxu0 0
    %647 = vmatpush2.bf16.msra.mxu0 0
    %648 = vmatprep.subr.bf16.mxu0 0
    %649 = vmatpush2.bf16.msra.mxu0 %v618
    %650 = vmatprep.subr.bf16.mxu0 0
    %651 = vmatpush2.bf16.msra.mxu0 %v505
    %652 = vmatprep.mubr.bf16.mxu0 %v518
    %653 = vmatmul.mubr.bf16.gmra.mxu0 %v363
    %v654 = vpop.f32.mrf.mxu0
    %v655 = vadd.f32 0.0, %v654
    %v656 = vpop.f32.mrf.mxu0
    %v657 = vpop.f32.mrf.mxu0
    %v658 = vadd.f32 0.0, %v657
    %v659 = vpop.f32.mrf.mxu0
    %660 = vmatprep.mubr.bf16.mxu0 %v521
    %661 = vmatmul.mubr.bf16.gmra.mxu0 %v365
    %v662 = vpop.f32.mrf.mxu0
    %v663 = vadd.f32 0.0, %v662
    %v664 = vpop.f32.mrf.mxu0
    %v665 = vpop.f32.mrf.mxu0
    %v666 = vadd.f32 0.0, %v665
    %v667 = vpop.f32.mrf.mxu0
    %668 = vmatprep.mubr.bf16.mxu0 %v524
    %669 = vmatmul.mubr.bf16.gmra.mxu0 %v367
    %v670 = vpop.f32.mrf.mxu0
    %v671 = vadd.f32 0.0, %v670
    %v672 = vpop.f32.mrf.mxu0
    %v673 = vpop.f32.mrf.mxu0
    %v674 = vadd.f32 0.0, %v673
    %v675 = vpop.f32.mrf.mxu0
    %676 = vmatprep.mubr.bf16.mxu0 %v527
    %677 = vmatmul.mubr.bf16.gmra.mxu0 %v369
    %v678 = vpop.f32.mrf.mxu0
    %v679 = vadd.f32 0.0, %v678
    %v680 = vpop.f32.mrf.mxu0
    %v681 = vpop.f32.mrf.mxu0
    %v682 = vadd.f32 0.0, %v681
    %v683 = vpop.f32.mrf.mxu0
    %684 = vmatprep.mubr.bf16.mxu0 %v530
    %685 = vmatmul.mubr.bf16.gmra.mxu0 %v371
    %v686 = vpop.f32.mrf.mxu0
    %v687 = vadd.f32 0.0, %v686
    %v688 = vpop.f32.mrf.mxu0
    %v689 = vpop.f32.mrf.mxu0
    %v690 = vadd.f32 0.0, %v689
    %v691 = vpop.f32.mrf.mxu0
    %692 = vmatprep.mubr.bf16.mxu0 %v533
    %693 = vmatmul.mubr.bf16.gmra.mxu0 %v373
    %v694 = vpop.f32.mrf.mxu0
    %v695 = vadd.f32 0.0, %v694
    %v696 = vpop.f32.mrf.mxu0
    %v697 = vpop.f32.mrf.mxu0
    %v698 = vadd.f32 0.0, %v697
    %v699 = vpop.f32.mrf.mxu0
    %700 = vmatprep.mubr.bf16.mxu0 %v536
    %701 = vmatmul.mubr.bf16.gmra.mxu0 %v375
    %v702 = vpop.f32.mrf.mxu0
    %v703 = vadd.f32 0.0, %v702
    %v704 = vpop.f32.mrf.mxu0
    %v705 = vpop.f32.mrf.mxu0
    %v706 = vadd.f32 0.0, %v705
    %v707 = vpop.f32.mrf.mxu0
    %708 = vmatprep.mubr.bf16.mxu0 %v539
    %709 = vmatmul.mubr.bf16.gmra.mxu0 %v377
    %v710 = vpop.f32.mrf.mxu0
    %v711 = vadd.f32 0.0, %v710
    %v712 = vpop.f32.mrf.mxu0
    %v713 = vpop.f32.mrf.mxu0
    %v714 = vadd.f32 0.0, %v713
    %v715 = vpop.f32.mrf.mxu0
    %716 = vmatprep.mubr.bf16.mxu0 %v542
    %717 = vmatmul.mubr.bf16.gmra.mxu0 %v379
    %v718 = vpop.f32.mrf.mxu0
    %v719 = vadd.f32 0.0, %v718
    %v720 = vpop.f32.mrf.mxu0
    %v721 = vpop.f32.mrf.mxu0
    %v722 = vadd.f32 0.0, %v721
    %v723 = vpop.f32.mrf.mxu0
    %724 = vmatprep.mubr.bf16.mxu0 %v545
    %725 = vmatmul.mubr.bf16.gmra.mxu0 %v381
    %v726 = vpop.f32.mrf.mxu0
    %v727 = vadd.f32 0.0, %v726
    %v728 = vpop.f32.mrf.mxu0
    %v729 = vpop.f32.mrf.mxu0
    %v730 = vadd.f32 0.0, %v729
    %v731 = vpop.f32.mrf.mxu0
    %732 = vmatprep.mubr.bf16.mxu0 %v548
    %733 = vmatmul.mubr.bf16.gmra.mxu0 %v383
    %v734 = vpop.f32.mrf.mxu0
    %v735 = vadd.f32 0.0, %v734
    %v736 = vpop.f32.mrf.mxu0
    %v737 = vpop.f32.mrf.mxu0
    %v738 = vadd.f32 0.0, %v737
    %v739 = vpop.f32.mrf.mxu0
    %740 = vmatprep.mubr.bf16.mxu0 %v551
    %741 = vmatmul.mubr.bf16.gmra.mxu0 %v385
    %v742 = vpop.f32.mrf.mxu0
    %v743 = vadd.f32 0.0, %v742
    %v744 = vpop.f32.mrf.mxu0
    %v745 = vpop.f32.mrf.mxu0
    %v746 = vadd.f32 0.0, %v745
    %v747 = vpop.f32.mrf.mxu0
    %748 = vmatprep.mubr.bf16.mxu0 %v554
    %749 = vmatmul.mubr.bf16.gmra.mxu0 %v387
    %v750 = vpop.f32.mrf.mxu0
    %v751 = vadd.f32 0.0, %v750
    %v752 = vpop.f32.mrf.mxu0
    %v753 = vpop.f32.mrf.mxu0
    %v754 = vadd.f32 0.0, %v753
    %v755 = vpop.f32.mrf.mxu0
    %756 = vmatprep.mubr.bf16.mxu0 %v557
    %757 = vmatmul.mubr.bf16.gmra.mxu0 %v389
    %v758 = vpop.f32.mrf.mxu0
    %v759 = vadd.f32 0.0, %v758
    %v760 = vpop.f32.mrf.mxu0
    %v761 = vpop.f32.mrf.mxu0
    %v762 = vadd.f32 0.0, %v761
    %v763 = vpop.f32.mrf.mxu0
    %764 = vmatprep.mubr.bf16.mxu0 %v560
    %765 = vmatmul.mubr.bf16.gmra.mxu0 %v391
    %v766 = vpop.f32.mrf.mxu0
    %v767 = vadd.f32 0.0, %v766
    %v768 = vpop.f32.mrf.mxu0
    %v769 = vpop.f32.mrf.mxu0
    %v770 = vadd.f32 0.0, %v769
    %v771 = vpop.f32.mrf.mxu0
    %772 = vmatprep.mubr.bf16.mxu0 %v563
    %773 = vmatmul.mubr.bf16.gmra.mxu0 %v393
    %v774 = vpop.f32.mrf.mxu0
    %v775 = vadd.f32 0.0, %v774
    %v776 = vpop.f32.mrf.mxu0
    %v777 = vpop.f32.mrf.mxu0
    %v778 = vadd.f32 0.0, %v777
    %v779 = vpop.f32.mrf.mxu0
    %780 = vmatprep.mubr.bf16.mxu0 %v566
    %781 = vmatmul.mubr.bf16.gmra.mxu0 %v395
    %v782 = vpop.f32.mrf.mxu0
    %v783 = vadd.f32 0.0, %v782
    %v784 = vpop.f32.mrf.mxu0
    %v785 = vpop.f32.mrf.mxu0
    %v786 = vadd.f32 0.0, %v785
    %v787 = vpop.f32.mrf.mxu0
    %788 = vmatprep.mubr.bf16.mxu0 %v569
    %789 = vmatmul.mubr.bf16.gmra.mxu0 %v397
    %v790 = vpop.f32.mrf.mxu0
    %v791 = vadd.f32 0.0, %v790
    %v792 = vpop.f32.mrf.mxu0
    %v793 = vpop.f32.mrf.mxu0
    %v794 = vadd.f32 0.0, %v793
    %v795 = vpop.f32.mrf.mxu0
    %796 = vmatprep.mubr.bf16.mxu0 %v572
    %797 = vmatmul.mubr.bf16.gmra.mxu0 %v399
    %v798 = vpop.f32.mrf.mxu0
    %v799 = vadd.f32 0.0, %v798
    %v800 = vpop.f32.mrf.mxu0
    %v801 = vpop.f32.mrf.mxu0
    %v802 = vadd.f32 0.0, %v801
    %v803 = vpop.f32.mrf.mxu0
    %804 = vmatprep.mubr.bf16.mxu0 %v575
    %805 = vmatmul.mubr.bf16.gmra.mxu0 %v401
    %v806 = vpop.f32.mrf.mxu0
    %v807 = vadd.f32 0.0, %v806
    %v808 = vpop.f32.mrf.mxu0
    %v809 = vpop.f32.mrf.mxu0
    %v810 = vadd.f32 0.0, %v809
    %v811 = vpop.f32.mrf.mxu0
    %812 = vmatprep.mubr.bf16.mxu0 %v578
    %813 = vmatmul.mubr.bf16.gmra.mxu0 %v403
    %v814 = vpop.f32.mrf.mxu0
    %v815 = vadd.f32 0.0, %v814
    %v816 = vpop.f32.mrf.mxu0
    %v817 = vpop.f32.mrf.mxu0
    %v818 = vadd.f32 0.0, %v817
    %v819 = vpop.f32.mrf.mxu0
    %820 = vmatprep.mubr.bf16.mxu0 %v581
    %821 = vmatmul.mubr.bf16.gmra.mxu0 %v405
    %v822 = vpop.f32.mrf.mxu0
    %v823 = vadd.f32 0.0, %v822
    %v824 = vpop.f32.mrf.mxu0
    %v825 = vpop.f32.mrf.mxu0
    %v826 = vadd.f32 0.0, %v825
    %v827 = vpop.f32.mrf.mxu0
    %828 = vmatprep.mubr.bf16.mxu0 %v584
    %829 = vmatmul.mubr.bf16.gmra.mxu0 %v407
    %v830 = vpop.f32.mrf.mxu0
    %v831 = vadd.f32 0.0, %v830
    %v832 = vpop.f32.mrf.mxu0
    %v833 = vpop.f32.mrf.mxu0
    %v834 = vadd.f32 0.0, %v833
    %v835 = vpop.f32.mrf.mxu0
    %836 = vmatprep.mubr.bf16.mxu0 %v587
    %837 = vmatmul.mubr.bf16.gmra.mxu0 %v409
    %v838 = vpop.f32.mrf.mxu0
    %v839 = vadd.f32 0.0, %v838
    %v840 = vpop.f32.mrf.mxu0
    %v841 = vpop.f32.mrf.mxu0
    %v842 = vadd.f32 0.0, %v841
    %v843 = vpop.f32.mrf.mxu0
    %844 = vmatprep.mubr.bf16.mxu0 %v590
    %845 = vmatmul.mubr.bf16.gmra.mxu0 %v411
    %v846 = vpop.f32.mrf.mxu0
    %v847 = vadd.f32 0.0, %v846
    %v848 = vpop.f32.mrf.mxu0
    %v849 = vpop.f32.mrf.mxu0
    %v850 = vadd.f32 0.0, %v849
    %v851 = vpop.f32.mrf.mxu0
    %852 = vmatprep.mubr.bf16.mxu0 %v593
    %853 = vmatmul.mubr.bf16.gmra.mxu0 %v413
    %v854 = vpop.f32.mrf.mxu0
    %v855 = vadd.f32 0.0, %v854
    %v856 = vpop.f32.mrf.mxu0
    %v857 = vpop.f32.mrf.mxu0
    %v858 = vadd.f32 0.0, %v857
    %v859 = vpop.f32.mrf.mxu0
    %860 = vmatprep.mubr.bf16.mxu0 %v596
    %861 = vmatmul.mubr.bf16.gmra.mxu0 %v415
    %v862 = vpop.f32.mrf.mxu0
    %v863 = vadd.f32 0.0, %v862
    %v864 = vpop.f32.mrf.mxu0
    %v865 = vpop.f32.mrf.mxu0
    %v866 = vadd.f32 0.0, %v865
    %v867 = vpop.f32.mrf.mxu0
    %868 = vmatprep.mubr.bf16.mxu0 %v599
    %869 = vmatmul.mubr.bf16.gmra.mxu0 %v417
    %v870 = vpop.f32.mrf.mxu0
    %v871 = vadd.f32 0.0, %v870
    %v872 = vpop.f32.mrf.mxu0
    %v873 = vpop.f32.mrf.mxu0
    %v874 = vadd.f32 0.0, %v873
    %v875 = vpop.f32.mrf.mxu0
    %876 = vmatprep.mubr.bf16.mxu0 %v602
    %877 = vmatmul.mubr.bf16.gmra.mxu0 %v419
    %v878 = vpop.f32.mrf.mxu0
    %v879 = vadd.f32 0.0, %v878
    %v880 = vpop.f32.mrf.mxu0
    %v881 = vpop.f32.mrf.mxu0
    %v882 = vadd.f32 0.0, %v881
    %v883 = vpop.f32.mrf.mxu0
    %884 = vmatprep.mubr.bf16.mxu0 %v605
    %885 = vmatmul.mubr.bf16.gmra.mxu0 %v421
    %v886 = vpop.f32.mrf.mxu0
    %v887 = vadd.f32 0.0, %v886
    %v888 = vpop.f32.mrf.mxu0
    %v889 = vpop.f32.mrf.mxu0
    %v890 = vadd.f32 0.0, %v889
    %v891 = vpop.f32.mrf.mxu0
    %892 = vmatprep.mubr.bf16.mxu0 %v608
    %893 = vmatmul.mubr.bf16.gmra.mxu0 %v423
    %v894 = vpop.f32.mrf.mxu0
    %v895 = vadd.f32 0.0, %v894
    %v896 = vpop.f32.mrf.mxu0
    %v897 = vpop.f32.mrf.mxu0
    %v898 = vadd.f32 0.0, %v897
    %v899 = vpop.f32.mrf.mxu0
    %900 = vmatprep.mubr.bf16.mxu0 %v611
    %901 = vmatmul.mubr.bf16.gmra.mxu0 %v425
    %v902 = vpop.f32.mrf.mxu0
    %v903 = vadd.f32 0.0, %v902
    %v904 = vpop.f32.mrf.mxu0
    %v905 = vpop.f32.mrf.mxu0
    %v906 = vadd.f32 0.0, %v905
    %v907 = vpop.f32.mrf.mxu0
    %908 = vdwg.mxu0
    %v909 = vld [vmem:[#allocation2] sm:$0xff]
    %v910 = vld [vmem:[#allocation2 + $0x8] sm:$0xff]
    %v911 = vld [vmem:[#allocation2 + $0x10] sm:$0xff]
    %v912 = vld [vmem:[#allocation2 + $0x18] sm:$0xff]
    %v913 = vld [vmem:[#allocation2 + $0x20] sm:$0xff]
    %v914 = vld [vmem:[#allocation2 + $0x28] sm:$0xff]
    %v915 = vld [vmem:[#allocation2 + $0x30] sm:$0xff]
    %v916 = vld [vmem:[#allocation2 + $0x38] sm:$0xff]
    %v917 = vld [vmem:[#allocation2 + $0x40] sm:$0xff]
    %v918 = vld [vmem:[#allocation2 + $0x48] sm:$0xff]
    %v919 = vld [vmem:[#allocation2 + $0x50] sm:$0xff]
    %v920 = vld [vmem:[#allocation2 + $0x58] sm:$0xff]
    %v921 = vld [vmem:[#allocation2 + $0x60] sm:$0xff]
    %v922 = vld [vmem:[#allocation2 + $0x68] sm:$0xff]
    %v923 = vld [vmem:[#allocation2 + $0x70] sm:$0xff]
    %v924 = vld [vmem:[#allocation2 + $0x78] sm:$0xff]
    %v925 = vld [vmem:[#allocation2 + $0x80] sm:$0xff]
    %v926 = vld [vmem:[#allocation2 + $0x88] sm:$0xff]
    %v927 = vld [vmem:[#allocation2 + $0x90] sm:$0xff]
    %v928 = vld [vmem:[#allocation2 + $0x98] sm:$0xff]
    %v929 = vld [vmem:[#allocation2 + $0xa0] sm:$0xff]
    %v930 = vld [vmem:[#allocation2 + $0xa8] sm:$0xff]
    %v931 = vld [vmem:[#allocation2 + $0xb0] sm:$0xff]
    %v932 = vld [vmem:[#allocation2 + $0xb8] sm:$0xff]
    %v933 = vld [vmem:[#allocation2 + $0xc0] sm:$0xff]
    %v934 = vld [vmem:[#allocation2 + $0xc8] sm:$0xff]
    %v935 = vld [vmem:[#allocation2 + $0xd0] sm:$0xff]
    %v936 = vld [vmem:[#allocation2 + $0xd8] sm:$0xff]
    %v937 = vld [vmem:[#allocation2 + $0xe0] sm:$0xff]
    %v938 = vld [vmem:[#allocation2 + $0xe8] sm:$0xff]
    %v939 = vld [vmem:[#allocation2 + $0xf0] sm:$0xff]
    %v940 = vld [vmem:[#allocation2 + $0xf8] sm:$0xff]
    %v941 = vld [vmem:[#allocation2 + $0x100] sm:$0xff]
    %v942 = vld [vmem:[#allocation2 + $0x108] sm:$0xff]
    %v943 = vld [vmem:[#allocation2 + $0x110] sm:$0xff]
    %v944 = vld [vmem:[#allocation2 + $0x118] sm:$0xff]
    %v945 = vld [vmem:[#allocation2 + $0x120] sm:$0xff]
    %v946 = vld [vmem:[#allocation2 + $0x128] sm:$0xff]
    %v947 = vld [vmem:[#allocation2 + $0x130] sm:$0xff]
    %v948 = vld [vmem:[#allocation2 + $0x138] sm:$0xff]
    %v949 = vld [vmem:[#allocation2 + $0x140] sm:$0xff]
    %v950 = vld [vmem:[#allocation2 + $0x148] sm:$0xff]
    %v951 = vld [vmem:[#allocation2 + $0x150] sm:$0xff]
    %v952 = vld [vmem:[#allocation2 + $0x158] sm:$0xff]
    %v953 = vld [vmem:[#allocation2 + $0x160] sm:$0xff]
    %v954 = vld [vmem:[#allocation2 + $0x168] sm:$0xff]
    %v955 = vld [vmem:[#allocation2 + $0x170] sm:$0xff]
    %v956 = vld [vmem:[#allocation2 + $0x178] sm:$0xff]
    %v957 = vld [vmem:[#allocation2 + $0x180] sm:$0xff]
    %v958 = vld [vmem:[#allocation2 + $0x188] sm:$0xff]
    %v959 = vld [vmem:[#allocation2 + $0x190] sm:$0xff]
    %v960 = vld [vmem:[#allocation2 + $0x198] sm:$0xff]
    %v961 = vld [vmem:[#allocation2 + $0x1a0] sm:$0xff]
    %v962 = vld [vmem:[#allocation2 + $0x1a8] sm:$0xff]
    %v963 = vld [vmem:[#allocation2 + $0x1b0] sm:$0xff]
    %v964 = vld [vmem:[#allocation2 + $0x1b8] sm:$0xff]
    %v965 = vld [vmem:[#allocation2 + $0x1c0] sm:$0xff]
    %v966 = vld [vmem:[#allocation2 + $0x1c8] sm:$0xff]
    %v967 = vld [vmem:[#allocation2 + $0x1d0] sm:$0xff]
    %v968 = vld [vmem:[#allocation2 + $0x1d8] sm:$0xff]
    %v969 = vld [vmem:[#allocation2 + $0x1e0] sm:$0xff]
    %v970 = vld [vmem:[#allocation2 + $0x1e8] sm:$0xff]
    %v971 = vld [vmem:[#allocation2 + $0x1f0] sm:$0xff]
    %v972 = vld [vmem:[#allocation2 + $0x1f8] sm:$0xff]
    %v973 = vadd.f32 %v909, %v655
    %v974 = vadd.f32 %v910, %v658
    %v975 = vadd.f32 %v911, %v663
    %v976 = vadd.f32 %v912, %v666
    %v977 = vadd.f32 %v913, %v671
    %v978 = vadd.f32 %v914, %v674
    %v979 = vadd.f32 %v915, %v679
    %v980 = vadd.f32 %v916, %v682
    %v981 = vadd.f32 %v917, %v687
    %v982 = vadd.f32 %v918, %v690
    %v983 = vadd.f32 %v919, %v695
    %v984 = vadd.f32 %v920, %v698
    %v985 = vadd.f32 %v921, %v703
    %v986 = vadd.f32 %v922, %v706
    %v987 = vadd.f32 %v923, %v711
    %v988 = vadd.f32 %v924, %v714
    %v989 = vadd.f32 %v925, %v719
    %v990 = vadd.f32 %v926, %v722
    %v991 = vadd.f32 %v927, %v727
    %v992 = vadd.f32 %v928, %v730
    %v993 = vadd.f32 %v929, %v735
    %v994 = vadd.f32 %v930, %v738
    %v995 = vadd.f32 %v931, %v743
    %v996 = vadd.f32 %v932, %v746
    %v997 = vadd.f32 %v933, %v751
    %v998 = vadd.f32 %v934, %v754
    %v999 = vadd.f32 %v935, %v759
    %v1000 = vadd.f32 %v936, %v762
    %v1001 = vadd.f32 %v937, %v767
    %v1002 = vadd.f32 %v938, %v770
    %v1003 = vadd.f32 %v939, %v775
    %v1004 = vadd.f32 %v940, %v778
    %v1005 = vadd.f32 %v941, %v783
    %v1006 = vadd.f32 %v942, %v786
    %v1007 = vadd.f32 %v943, %v791
    %v1008 = vadd.f32 %v944, %v794
    %v1009 = vadd.f32 %v945, %v799
    %v1010 = vadd.f32 %v946, %v802
    %v1011 = vadd.f32 %v947, %v807
    %v1012 = vadd.f32 %v948, %v810
    %v1013 = vadd.f32 %v949, %v815
    %v1014 = vadd.f32 %v950, %v818
    %v1015 = vadd.f32 %v951, %v823
    %v1016 = vadd.f32 %v952, %v826
    %v1017 = vadd.f32 %v953, %v831
    %v1018 = vadd.f32 %v954, %v834
    %v1019 = vadd.f32 %v955, %v839
    %v1020 = vadd.f32 %v956, %v842
    %v1021 = vadd.f32 %v957, %v847
    %v1022 = vadd.f32 %v958, %v850
    %v1023 = vadd.f32 %v959, %v855
    %v1024 = vadd.f32 %v960, %v858
    %v1025 = vadd.f32 %v961, %v863
    %v1026 = vadd.f32 %v962, %v866
    %v1027 = vadd.f32 %v963, %v871
    %v1028 = vadd.f32 %v964, %v874
    %v1029 = vadd.f32 %v965, %v879
    %v1030 = vadd.f32 %v966, %v882
    %v1031 = vadd.f32 %v967, %v887
    %v1032 = vadd.f32 %v968, %v890
    %v1033 = vadd.f32 %v969, %v895
    %v1034 = vadd.f32 %v970, %v898
    %v1035 = vadd.f32 %v971, %v903
    %v1036 = vadd.f32 %v972, %v906
    %vm1037 = vcmask 523264
    %1038 = vst.msk [vmem:[#allocation2] sm:$0xff] %vm1037, %v973
    %1039 = vst.msk [vmem:[#allocation2 + $0x8] sm:$0xff] %vm1037, %v974
    %1040 = vst.msk [vmem:[#allocation2 + $0x10] sm:$0xff] %vm1037, %v975
    %1041 = vst.msk [vmem:[#allocation2 + $0x18] sm:$0xff] %vm1037, %v976
    %1042 = vst.msk [vmem:[#allocation2 + $0x20] sm:$0xff] %vm1037, %v977
    %1043 = vst.msk [vmem:[#allocation2 + $0x28] sm:$0xff] %vm1037, %v978
    %1044 = vst.msk [vmem:[#allocation2 + $0x30] sm:$0xff] %vm1037, %v979
    %1045 = vst.msk [vmem:[#allocation2 + $0x38] sm:$0xff] %vm1037, %v980
    %1046 = vst.msk [vmem:[#allocation2 + $0x40] sm:$0xff] %vm1037, %v981
    %1047 = vst.msk [vmem:[#allocation2 + $0x48] sm:$0xff] %vm1037, %v982
    %1048 = vst.msk [vmem:[#allocation2 + $0x50] sm:$0xff] %vm1037, %v983
    %1049 = vst.msk [vmem:[#allocation2 + $0x58] sm:$0xff] %vm1037, %v984
    %1050 = vst.msk [vmem:[#allocation2 + $0x60] sm:$0xff] %vm1037, %v985
    %1051 = vst.msk [vmem:[#allocation2 + $0x68] sm:$0xff] %vm1037, %v986
    %1052 = vst.msk [vmem:[#allocation2 + $0x70] sm:$0xff] %vm1037, %v987
    %1053 = vst.msk [vmem:[#allocation2 + $0x78] sm:$0xff] %vm1037, %v988
    %1054 = vst.msk [vmem:[#allocation2 + $0x80] sm:$0xff] %vm1037, %v989
    %1055 = vst.msk [vmem:[#allocation2 + $0x88] sm:$0xff] %vm1037, %v990
    %1056 = vst.msk [vmem:[#allocation2 + $0x90] sm:$0xff] %vm1037, %v991
    %1057 = vst.msk [vmem:[#allocation2 + $0x98] sm:$0xff] %vm1037, %v992
    %1058 = vst.msk [vmem:[#allocation2 + $0xa0] sm:$0xff] %vm1037, %v993
    %1059 = vst.msk [vmem:[#allocation2 + $0xa8] sm:$0xff] %vm1037, %v994
    %1060 = vst.msk [vmem:[#allocation2 + $0xb0] sm:$0xff] %vm1037, %v995
    %1061 = vst.msk [vmem:[#allocation2 + $0xb8] sm:$0xff] %vm1037, %v996
    %1062 = vst.msk [vmem:[#allocation2 + $0xc0] sm:$0xff] %vm1037, %v997
    %1063 = vst.msk [vmem:[#allocation2 + $0xc8] sm:$0xff] %vm1037, %v998
    %1064 = vst.msk [vmem:[#allocation2 + $0xd0] sm:$0xff] %vm1037, %v999
    %1065 = vst.msk [vmem:[#allocation2 + $0xd8] sm:$0xff] %vm1037, %v1000
    %1066 = vst.msk [vmem:[#allocation2 + $0xe0] sm:$0xff] %vm1037, %v1001
    %1067 = vst.msk [vmem:[#allocation2 + $0xe8] sm:$0xff] %vm1037, %v1002
    %1068 = vst.msk [vmem:[#allocation2 + $0xf0] sm:$0xff] %vm1037, %v1003
    %1069 = vst.msk [vmem:[#allocation2 + $0xf8] sm:$0xff] %vm1037, %v1004
    %1070 = vst.msk [vmem:[#allocation2 + $0x100] sm:$0xff] %vm1037, %v1005
    %1071 = vst.msk [vmem:[#allocation2 + $0x108] sm:$0xff] %vm1037, %v1006
    %1072 = vst.msk [vmem:[#allocation2 + $0x110] sm:$0xff] %vm1037, %v1007
    %1073 = vst.msk [vmem:[#allocation2 + $0x118] sm:$0xff] %vm1037, %v1008
    %1074 = vst.msk [vmem:[#allocation2 + $0x120] sm:$0xff] %vm1037, %v1009
    %1075 = vst.msk [vmem:[#allocation2 + $0x128] sm:$0xff] %vm1037, %v1010
    %1076 = vst.msk [vmem:[#allocation2 + $0x130] sm:$0xff] %vm1037, %v1011
    %1077 = vst.msk [vmem:[#allocation2 + $0x138] sm:$0xff] %vm1037, %v1012
    %1078 = vst.msk [vmem:[#allocation2 + $0x140] sm:$0xff] %vm1037, %v1013
    %1079 = vst.msk [vmem:[#allocation2 + $0x148] sm:$0xff] %vm1037, %v1014
    %1080 = vst.msk [vmem:[#allocation2 + $0x150] sm:$0xff] %vm1037, %v1015
    %1081 = vst.msk [vmem:[#allocation2 + $0x158] sm:$0xff] %vm1037, %v1016
    %1082 = vst.msk [vmem:[#allocation2 + $0x160] sm:$0xff] %vm1037, %v1017
    %1083 = vst.msk [vmem:[#allocation2 + $0x168] sm:$0xff] %vm1037, %v1018
    %1084 = vst.msk [vmem:[#allocation2 + $0x170] sm:$0xff] %vm1037, %v1019
    %1085 = vst.msk [vmem:[#allocation2 + $0x178] sm:$0xff] %vm1037, %v1020
    %1086 = vst.msk [vmem:[#allocation2 + $0x180] sm:$0xff] %vm1037, %v1021
    %1087 = vst.msk [vmem:[#allocation2 + $0x188] sm:$0xff] %vm1037, %v1022
    %1088 = vst.msk [vmem:[#allocation2 + $0x190] sm:$0xff] %vm1037, %v1023
    %1089 = vst.msk [vmem:[#allocation2 + $0x198] sm:$0xff] %vm1037, %v1024
    %1090 = vst.msk [vmem:[#allocation2 + $0x1a0] sm:$0xff] %vm1037, %v1025
    %1091 = vst.msk [vmem:[#allocation2 + $0x1a8] sm:$0xff] %vm1037, %v1026
    %1092 = vst.msk [vmem:[#allocation2 + $0x1b0] sm:$0xff] %vm1037, %v1027
    %1093 = vst.msk [vmem:[#allocation2 + $0x1b8] sm:$0xff] %vm1037, %v1028
    %1094 = vst.msk [vmem:[#allocation2 + $0x1c0] sm:$0xff] %vm1037, %v1029
    %1095 = vst.msk [vmem:[#allocation2 + $0x1c8] sm:$0xff] %vm1037, %v1030
    %1096 = vst.msk [vmem:[#allocation2 + $0x1d0] sm:$0xff] %vm1037, %v1031
    %1097 = vst.msk [vmem:[#allocation2 + $0x1d8] sm:$0xff] %vm1037, %v1032
    %1098 = vst.msk [vmem:[#allocation2 + $0x1e0] sm:$0xff] %vm1037, %v1033
    %1099 = vst.msk [vmem:[#allocation2 + $0x1e8] sm:$0xff] %vm1037, %v1034
    %1100 = vst.msk [vmem:[#allocation2 + $0x1f0] sm:$0xff] %vm1037, %v1035
    %1101 = vst.msk [vmem:[#allocation2 + $0x1f8] sm:$0xff] %vm1037, %v1036
    // Predicated region
    $region22: #{conv2d.1} parent=1 // pred_check
      %p1102 = pneg %p19
    $region23: #{conv2d.1} parent=1 // pred_check_branch
      %1104 = sbr.rel (%p1102) target = $region25
    $region24: #{conv2d.1} parent=1 // pred_region
      %v1105 = vld [vmem:[#allocation2] sm:$0xff]
      %v1106 = vld [vmem:[#allocation2 + $0x8] sm:$0xff]
      %v1107 = vld [vmem:[#allocation2 + $0x10] sm:$0xff]
      %v1108 = vld [vmem:[#allocation2 + $0x18] sm:$0xff]
      %v1109 = vld [vmem:[#allocation2 + $0x20] sm:$0xff]
      %v1110 = vld [vmem:[#allocation2 + $0x28] sm:$0xff]
      %v1111 = vld [vmem:[#allocation2 + $0x30] sm:$0xff]
      %v1112 = vld [vmem:[#allocation2 + $0x38] sm:$0xff]
      %v1113 = vld [vmem:[#allocation2 + $0x40] sm:$0xff]
      %v1114 = vld [vmem:[#allocation2 + $0x48] sm:$0xff]
      %v1115 = vld [vmem:[#allocation2 + $0x50] sm:$0xff]
      %v1116 = vld [vmem:[#allocation2 + $0x58] sm:$0xff]
      %v1117 = vld [vmem:[#allocation2 + $0x60] sm:$0xff]
      %v1118 = vld [vmem:[#allocation2 + $0x68] sm:$0xff]
      %v1119 = vld [vmem:[#allocation2 + $0x70] sm:$0xff]
      %v1120 = vld [vmem:[#allocation2 + $0x78] sm:$0xff]
      %v1121 = vld [vmem:[#allocation2 + $0x80] sm:$0xff]
      %v1122 = vld [vmem:[#allocation2 + $0x88] sm:$0xff]
      %v1123 = vld [vmem:[#allocation2 + $0x90] sm:$0xff]
      %v1124 = vld [vmem:[#allocation2 + $0x98] sm:$0xff]
      %v1125 = vld [vmem:[#allocation2 + $0xa0] sm:$0xff]
      %v1126 = vld [vmem:[#allocation2 + $0xa8] sm:$0xff]
      %v1127 = vld [vmem:[#allocation2 + $0xb0] sm:$0xff]
      %v1128 = vld [vmem:[#allocation2 + $0xb8] sm:$0xff]
      %v1129 = vld [vmem:[#allocation2 + $0xc0] sm:$0xff]
      %v1130 = vld [vmem:[#allocation2 + $0xc8] sm:$0xff]
      %v1131 = vld [vmem:[#allocation2 + $0xd0] sm:$0xff]
      %v1132 = vld [vmem:[#allocation2 + $0xd8] sm:$0xff]
      %v1133 = vld [vmem:[#allocation2 + $0xe0] sm:$0xff]
      %v1134 = vld [vmem:[#allocation2 + $0xe8] sm:$0xff]
      %v1135 = vld [vmem:[#allocation2 + $0xf0] sm:$0xff]
      %v1136 = vld [vmem:[#allocation2 + $0xf8] sm:$0xff]
      %v1137 = vld [vmem:[#allocation2 + $0x100] sm:$0xff]
      %v1138 = vld [vmem:[#allocation2 + $0x108] sm:$0xff]
      %v1139 = vld [vmem:[#allocation2 + $0x110] sm:$0xff]
      %v1140 = vld [vmem:[#allocation2 + $0x118] sm:$0xff]
      %v1141 = vld [vmem:[#allocation2 + $0x120] sm:$0xff]
      %v1142 = vld [vmem:[#allocation2 + $0x128] sm:$0xff]
      %v1143 = vld [vmem:[#allocation2 + $0x130] sm:$0xff]
      %v1144 = vld [vmem:[#allocation2 + $0x138] sm:$0xff]
      %v1145 = vld [vmem:[#allocation2 + $0x140] sm:$0xff]
      %v1146 = vld [vmem:[#allocation2 + $0x148] sm:$0xff]
      %v1147 = vld [vmem:[#allocation2 + $0x150] sm:$0xff]
      %v1148 = vld [vmem:[#allocation2 + $0x158] sm:$0xff]
      %v1149 = vld [vmem:[#allocation2 + $0x160] sm:$0xff]
      %v1150 = vld [vmem:[#allocation2 + $0x168] sm:$0xff]
      %v1151 = vld [vmem:[#allocation2 + $0x170] sm:$0xff]
      %v1152 = vld [vmem:[#allocation2 + $0x178] sm:$0xff]
      %v1153 = vld [vmem:[#allocation2 + $0x180] sm:$0xff]
      %v1154 = vld [vmem:[#allocation2 + $0x188] sm:$0xff]
      %v1155 = vld [vmem:[#allocation2 + $0x190] sm:$0xff]
      %v1156 = vld [vmem:[#allocation2 + $0x198] sm:$0xff]
      %v1157 = vld [vmem:[#allocation2 + $0x1a0] sm:$0xff]
      %v1158 = vld [vmem:[#allocation2 + $0x1a8] sm:$0xff]
      %v1159 = vld [vmem:[#allocation2 + $0x1b0] sm:$0xff]
      %v1160 = vld [vmem:[#allocation2 + $0x1b8] sm:$0xff]
      %v1161 = vld [vmem:[#allocation2 + $0x1c0] sm:$0xff]
      %v1162 = vld [vmem:[#allocation2 + $0x1c8] sm:$0xff]
      %v1163 = vld [vmem:[#allocation2 + $0x1d0] sm:$0xff]
      %v1164 = vld [vmem:[#allocation2 + $0x1d8] sm:$0xff]
      %v1165 = vld [vmem:[#allocation2 + $0x1e0] sm:$0xff]
      %v1166 = vld [vmem:[#allocation2 + $0x1e8] sm:$0xff]
      %v1167 = vld [vmem:[#allocation2 + $0x1f0] sm:$0xff]
      %v1168 = vld [vmem:[#allocation2 + $0x1f8] sm:$0xff]
      %v1169 = vld [vmem:[%s2] sm:$0x1]
      %v1171 = vlaneseq
      %v1172 = vshrl.u32 %v1171, 7
      %v1173 = vsub.s32 0, %v1172
      %v1174 = vrot.slane %v1169, %v1173
      %v1176 = vmul.f32 %v1105, %v1174
      %v1177 = vmul.f32 %v1106, %v1174
      %v1178 = vmul.f32 %v1107, %v1174
      %v1179 = vmul.f32 %v1108, %v1174
      %v1180 = vmul.f32 %v1109, %v1174
      %v1181 = vmul.f32 %v1110, %v1174
      %v1182 = vmul.f32 %v1111, %v1174
      %v1183 = vmul.f32 %v1112, %v1174
      %v1184 = vmul.f32 %v1113, %v1174
      %v1185 = vmul.f32 %v1114, %v1174
      %v1186 = vmul.f32 %v1115, %v1174
      %v1187 = vmul.f32 %v1116, %v1174
      %v1188 = vmul.f32 %v1117, %v1174
      %v1189 = vmul.f32 %v1118, %v1174
      %v1190 = vmul.f32 %v1119, %v1174
      %v1191 = vmul.f32 %v1120, %v1174
      %v1192 = vmul.f32 %v1121, %v1174
      %v1193 = vmul.f32 %v1122, %v1174
      %v1194 = vmul.f32 %v1123, %v1174
      %v1195 = vmul.f32 %v1124, %v1174
      %v1196 = vmul.f32 %v1125, %v1174
      %v1197 = vmul.f32 %v1126, %v1174
      %v1198 = vmul.f32 %v1127, %v1174
      %v1199 = vmul.f32 %v1128, %v1174
      %v1200 = vmul.f32 %v1129, %v1174
      %v1201 = vmul.f32 %v1130, %v1174
      %v1202 = vmul.f32 %v1131, %v1174
      %v1203 = vmul.f32 %v1132, %v1174
      %v1204 = vmul.f32 %v1133, %v1174
      %v1205 = vmul.f32 %v1134, %v1174
      %v1206 = vmul.f32 %v1135, %v1174
      %v1207 = vmul.f32 %v1136, %v1174
      %v1208 = vmul.f32 %v1137, %v1174
      %v1209 = vmul.f32 %v1138, %v1174
      %v1210 = vmul.f32 %v1139, %v1174
      %v1211 = vmul.f32 %v1140, %v1174
      %v1212 = vmul.f32 %v1141, %v1174
      %v1213 = vmul.f32 %v1142, %v1174
      %v1214 = vmul.f32 %v1143, %v1174
      %v1215 = vmul.f32 %v1144, %v1174
      %v1216 = vmul.f32 %v1145, %v1174
      %v1217 = vmul.f32 %v1146, %v1174
      %v1218 = vmul.f32 %v1147, %v1174
      %v1219 = vmul.f32 %v1148, %v1174
      %v1220 = vmul.f32 %v1149, %v1174
      %v1221 = vmul.f32 %v1150, %v1174
      %v1222 = vmul.f32 %v1151, %v1174
      %v1223 = vmul.f32 %v1152, %v1174
      %v1224 = vmul.f32 %v1153, %v1174
      %v1225 = vmul.f32 %v1154, %v1174
      %v1226 = vmul.f32 %v1155, %v1174
      %v1227 = vmul.f32 %v1156, %v1174
      %v1228 = vmul.f32 %v1157, %v1174
      %v1229 = vmul.f32 %v1158, %v1174
      %v1230 = vmul.f32 %v1159, %v1174
      %v1231 = vmul.f32 %v1160, %v1174
      %v1232 = vmul.f32 %v1161, %v1174
      %v1233 = vmul.f32 %v1162, %v1174
      %v1234 = vmul.f32 %v1163, %v1174
      %v1235 = vmul.f32 %v1164, %v1174
      %v1236 = vmul.f32 %v1165, %v1174
      %v1237 = vmul.f32 %v1166, %v1174
      %v1238 = vmul.f32 %v1167, %v1174
      %v1239 = vmul.f32 %v1168, %v1174
      %v1240 = vld [vmem:[%s3] sm:$0x1]
      %v1242 = vlaneseq
      %v1243 = vshrl.u32 %v1242, 7
      %v1244 = vsub.s32 0, %v1243
      %v1245 = vrot.slane %v1240, %v1244
      %v1247 = vadd.f32 %v1176, %v1245
      %v1248 = vadd.f32 %v1177, %v1245
      %v1249 = vadd.f32 %v1178, %v1245
      %v1250 = vadd.f32 %v1179, %v1245
      %v1251 = vadd.f32 %v1180, %v1245
      %v1252 = vadd.f32 %v1181, %v1245
      %v1253 = vadd.f32 %v1182, %v1245
      %v1254 = vadd.f32 %v1183, %v1245
      %v1255 = vadd.f32 %v1184, %v1245
      %v1256 = vadd.f32 %v1185, %v1245
      %v1257 = vadd.f32 %v1186, %v1245
      %v1258 = vadd.f32 %v1187, %v1245
      %v1259 = vadd.f32 %v1188, %v1245
      %v1260 = vadd.f32 %v1189, %v1245
      %v1261 = vadd.f32 %v1190, %v1245
      %v1262 = vadd.f32 %v1191, %v1245
      %v1263 = vadd.f32 %v1192, %v1245
      %v1264 = vadd.f32 %v1193, %v1245
      %v1265 = vadd.f32 %v1194, %v1245
      %v1266 = vadd.f32 %v1195, %v1245
      %v1267 = vadd.f32 %v1196, %v1245
      %v1268 = vadd.f32 %v1197, %v1245
      %v1269 = vadd.f32 %v1198, %v1245
      %v1270 = vadd.f32 %v1199, %v1245
      %v1271 = vadd.f32 %v1200, %v1245
      %v1272 = vadd.f32 %v1201, %v1245
      %v1273 = vadd.f32 %v1202, %v1245
      %v1274 = vadd.f32 %v1203, %v1245
      %v1275 = vadd.f32 %v1204, %v1245
      %v1276 = vadd.f32 %v1205, %v1245
      %v1277 = vadd.f32 %v1206, %v1245
      %v1278 = vadd.f32 %v1207, %v1245
      %v1279 = vadd.f32 %v1208, %v1245
      %v1280 = vadd.f32 %v1209, %v1245
      %v1281 = vadd.f32 %v1210, %v1245
      %v1282 = vadd.f32 %v1211, %v1245
      %v1283 = vadd.f32 %v1212, %v1245
      %v1284 = vadd.f32 %v1213, %v1245
      %v1285 = vadd.f32 %v1214, %v1245
      %v1286 = vadd.f32 %v1215, %v1245
      %v1287 = vadd.f32 %v1216, %v1245
      %v1288 = vadd.f32 %v1217, %v1245
      %v1289 = vadd.f32 %v1218, %v1245
      %v1290 = vadd.f32 %v1219, %v1245
      %v1291 = vadd.f32 %v1220, %v1245
      %v1292 = vadd.f32 %v1221, %v1245
      %v1293 = vadd.f32 %v1222, %v1245
      %v1294 = vadd.f32 %v1223, %v1245
      %v1295 = vadd.f32 %v1224, %v1245
      %v1296 = vadd.f32 %v1225, %v1245
      %v1297 = vadd.f32 %v1226, %v1245
      %v1298 = vadd.f32 %v1227, %v1245
      %v1299 = vadd.f32 %v1228, %v1245
      %v1300 = vadd.f32 %v1229, %v1245
      %v1301 = vadd.f32 %v1230, %v1245
      %v1302 = vadd.f32 %v1231, %v1245
      %v1303 = vadd.f32 %v1232, %v1245
      %v1304 = vadd.f32 %v1233, %v1245
      %v1305 = vadd.f32 %v1234, %v1245
      %v1306 = vadd.f32 %v1235, %v1245
      %v1307 = vadd.f32 %v1236, %v1245
      %v1308 = vadd.f32 %v1237, %v1245
      %v1309 = vadd.f32 %v1238, %v1245
      %v1310 = vadd.f32 %v1239, %v1245
      %v1311 = vmax.f32 %v1247, 0.0
      %v1312 = vmax.f32 %v1248, 0.0
      %v1313 = vmax.f32 %v1249, 0.0
      %v1314 = vmax.f32 %v1250, 0.0
      %v1315 = vmax.f32 %v1251, 0.0
      %v1316 = vmax.f32 %v1252, 0.0
      %v1317 = vmax.f32 %v1253, 0.0
      %v1318 = vmax.f32 %v1254, 0.0
      %v1319 = vmax.f32 %v1255, 0.0
      %v1320 = vmax.f32 %v1256, 0.0
      %v1321 = vmax.f32 %v1257, 0.0
      %v1322 = vmax.f32 %v1258, 0.0
      %v1323 = vmax.f32 %v1259, 0.0
      %v1324 = vmax.f32 %v1260, 0.0
      %v1325 = vmax.f32 %v1261, 0.0
      %v1326 = vmax.f32 %v1262, 0.0
      %v1327 = vmax.f32 %v1263, 0.0
      %v1328 = vmax.f32 %v1264, 0.0
      %v1329 = vmax.f32 %v1265, 0.0
      %v1330 = vmax.f32 %v1266, 0.0
      %v1331 = vmax.f32 %v1267, 0.0
      %v1332 = vmax.f32 %v1268, 0.0
      %v1333 = vmax.f32 %v1269, 0.0
      %v1334 = vmax.f32 %v1270, 0.0
      %v1335 = vmax.f32 %v1271, 0.0
      %v1336 = vmax.f32 %v1272, 0.0
      %v1337 = vmax.f32 %v1273, 0.0
      %v1338 = vmax.f32 %v1274, 0.0
      %v1339 = vmax.f32 %v1275, 0.0
      %v1340 = vmax.f32 %v1276, 0.0
      %v1341 = vmax.f32 %v1277, 0.0
      %v1342 = vmax.f32 %v1278, 0.0
      %v1343 = vmax.f32 %v1279, 0.0
      %v1344 = vmax.f32 %v1280, 0.0
      %v1345 = vmax.f32 %v1281, 0.0
      %v1346 = vmax.f32 %v1282, 0.0
      %v1347 = vmax.f32 %v1283, 0.0
      %v1348 = vmax.f32 %v1284, 0.0
      %v1349 = vmax.f32 %v1285, 0.0
      %v1350 = vmax.f32 %v1286, 0.0
      %v1351 = vmax.f32 %v1287, 0.0
      %v1352 = vmax.f32 %v1288, 0.0
      %v1353 = vmax.f32 %v1289, 0.0
      %v1354 = vmax.f32 %v1290, 0.0
      %v1355 = vmax.f32 %v1291, 0.0
      %v1356 = vmax.f32 %v1292, 0.0
      %v1357 = vmax.f32 %v1293, 0.0
      %v1358 = vmax.f32 %v1294, 0.0
      %v1359 = vmax.f32 %v1295, 0.0
      %v1360 = vmax.f32 %v1296, 0.0
      %v1361 = vmax.f32 %v1297, 0.0
      %v1362 = vmax.f32 %v1298, 0.0
      %v1363 = vmax.f32 %v1299, 0.0
      %v1364 = vmax.f32 %v1300, 0.0
      %v1365 = vmax.f32 %v1301, 0.0
      %v1366 = vmax.f32 %v1302, 0.0
      %v1367 = vmax.f32 %v1303, 0.0
      %v1368 = vmax.f32 %v1304, 0.0
      %v1369 = vmax.f32 %v1305, 0.0
      %v1370 = vmax.f32 %v1306, 0.0
      %v1371 = vmax.f32 %v1307, 0.0
      %v1372 = vmax.f32 %v1308, 0.0
      %v1373 = vmax.f32 %v1309, 0.0
      %v1374 = vmax.f32 %v1310, 0.0
      %v1375 = vpack.c.bf16 %v1312, %v1311
      %v1376 = vpack.c.bf16 %v1314, %v1313
      %v1377 = vpack.c.bf16 %v1316, %v1315
      %v1378 = vpack.c.bf16 %v1318, %v1317
      %v1379 = vpack.c.bf16 %v1320, %v1319
      %v1380 = vpack.c.bf16 %v1322, %v1321
      %v1381 = vpack.c.bf16 %v1324, %v1323
      %v1382 = vpack.c.bf16 %v1326, %v1325
      %v1383 = vpack.c.bf16 %v1328, %v1327
      %v1384 = vpack.c.bf16 %v1330, %v1329
      %v1385 = vpack.c.bf16 %v1332, %v1331
      %v1386 = vpack.c.bf16 %v1334, %v1333
      %v1387 = vpack.c.bf16 %v1336, %v1335
      %v1388 = vpack.c.bf16 %v1338, %v1337
      %v1389 = vpack.c.bf16 %v1340, %v1339
      %v1390 = vpack.c.bf16 %v1342, %v1341
      %v1391 = vpack.c.bf16 %v1344, %v1343
      %v1392 = vpack.c.bf16 %v1346, %v1345
      %v1393 = vpack.c.bf16 %v1348, %v1347
      %v1394 = vpack.c.bf16 %v1350, %v1349
      %v1395 = vpack.c.bf16 %v1352, %v1351
      %v1396 = vpack.c.bf16 %v1354, %v1353
      %v1397 = vpack.c.bf16 %v1356, %v1355
      %v1398 = vpack.c.bf16 %v1358, %v1357
      %v1399 = vpack.c.bf16 %v1360, %v1359
      %v1400 = vpack.c.bf16 %v1362, %v1361
      %v1401 = vpack.c.bf16 %v1364, %v1363
      %v1402 = vpack.c.bf16 %v1366, %v1365
      %v1403 = vpack.c.bf16 %v1368, %v1367
      %v1404 = vpack.c.bf16 %v1370, %v1369
      %v1405 = vpack.c.bf16 %v1372, %v1371
      %v1406 = vpack.c.bf16 %v1374, %v1373
      %v1439 = vunpack.c.l.b16 %v1375
      %v1440 = vunpack.c.h.b16 %v1375
      %v1441 = vunpack.c.l.b16 %v1376
      %v1442 = vunpack.c.h.b16 %v1376
      %v1443 = vunpack.c.l.b16 %v1377
      %v1444 = vunpack.c.h.b16 %v1377
      %v1445 = vunpack.c.l.b16 %v1378
      %v1446 = vunpack.c.h.b16 %v1378
      %v1447 = vunpack.c.l.b16 %v1379
      %v1448 = vunpack.c.h.b16 %v1379
      %v1449 = vunpack.c.l.b16 %v1380
      %v1450 = vunpack.c.h.b16 %v1380
      %v1451 = vunpack.c.l.b16 %v1381
      %v1452 = vunpack.c.h.b16 %v1381
      %v1453 = vunpack.c.l.b16 %v1382
      %v1454 = vunpack.c.h.b16 %v1382
      %v1455 = vunpack.c.l.b16 %v1383
      %v1456 = vunpack.c.h.b16 %v1383
      %v1457 = vunpack.c.l.b16 %v1384
      %v1458 = vunpack.c.h.b16 %v1384
      %v1459 = vunpack.c.l.b16 %v1385
      %v1460 = vunpack.c.h.b16 %v1385
      %v1461 = vunpack.c.l.b16 %v1386
      %v1462 = vunpack.c.h.b16 %v1386
      %v1463 = vunpack.c.l.b16 %v1387
      %v1464 = vunpack.c.h.b16 %v1387
      %v1465 = vunpack.c.l.b16 %v1388
      %v1466 = vunpack.c.h.b16 %v1388
      %v1467 = vunpack.c.l.b16 %v1389
      %v1468 = vunpack.c.h.b16 %v1389
      %v1469 = vunpack.c.l.b16 %v1390
      %v1470 = vunpack.c.h.b16 %v1390
      %v1471 = vunpack.c.l.b16 %v1391
      %v1472 = vunpack.c.h.b16 %v1391
      %v1473 = vunpack.c.l.b16 %v1392
      %v1474 = vunpack.c.h.b16 %v1392
      %v1475 = vunpack.c.l.b16 %v1393
      %v1476 = vunpack.c.h.b16 %v1393
      %v1477 = vunpack.c.l.b16 %v1394
      %v1478 = vunpack.c.h.b16 %v1394
      %v1479 = vunpack.c.l.b16 %v1395
      %v1480 = vunpack.c.h.b16 %v1395
      %v1481 = vunpack.c.l.b16 %v1396
      %v1482 = vunpack.c.h.b16 %v1396
      %v1483 = vunpack.c.l.b16 %v1397
      %v1484 = vunpack.c.h.b16 %v1397
      %v1485 = vunpack.c.l.b16 %v1398
      %v1486 = vunpack.c.h.b16 %v1398
      %v1487 = vunpack.c.l.b16 %v1399
      %v1488 = vunpack.c.h.b16 %v1399
      %v1489 = vunpack.c.l.b16 %v1400
      %v1490 = vunpack.c.h.b16 %v1400
      %v1491 = vunpack.c.l.b16 %v1401
      %v1492 = vunpack.c.h.b16 %v1401
      %v1493 = vunpack.c.l.b16 %v1402
      %v1494 = vunpack.c.h.b16 %v1402
      %v1495 = vunpack.c.l.b16 %v1403
      %v1496 = vunpack.c.h.b16 %v1403
      %v1497 = vunpack.c.l.b16 %v1404
      %v1498 = vunpack.c.h.b16 %v1404
      %v1499 = vunpack.c.l.b16 %v1405
      %v1500 = vunpack.c.h.b16 %v1405
      %v1501 = vunpack.c.l.b16 %v1406
      %v1502 = vunpack.c.h.b16 %v1406
      %v1503 = vpack.c.b16 %v1439, %v1439
      %v1504 = vpack.c.b16 %v1440, %v1440
      %v1505 = vpack.c.b16 %v1441, %v1441
      %v1506 = vpack.c.b16 %v1442, %v1442
      %v1507 = vpack.c.b16 %v1443, %v1443
      %v1508 = vpack.c.b16 %v1444, %v1444
      %v1509 = vpack.c.b16 %v1445, %v1445
      %v1510 = vpack.c.b16 %v1446, %v1446
      %v1511 = vpack.c.b16 %v1447, %v1447
      %v1512 = vpack.c.b16 %v1448, %v1448
      %v1513 = vpack.c.b16 %v1449, %v1449
      %v1514 = vpack.c.b16 %v1450, %v1450
      %v1515 = vpack.c.b16 %v1451, %v1451
      %v1516 = vpack.c.b16 %v1452, %v1452
      %v1517 = vpack.c.b16 %v1453, %v1453
      %v1518 = vpack.c.b16 %v1454, %v1454
      %v1519 = vpack.c.b16 %v1455, %v1455
      %v1520 = vpack.c.b16 %v1456, %v1456
      %v1521 = vpack.c.b16 %v1457, %v1457
      %v1522 = vpack.c.b16 %v1458, %v1458
      %v1523 = vpack.c.b16 %v1459, %v1459
      %v1524 = vpack.c.b16 %v1460, %v1460
      %v1525 = vpack.c.b16 %v1461, %v1461
      %v1526 = vpack.c.b16 %v1462, %v1462
      %v1527 = vpack.c.b16 %v1463, %v1463
      %v1528 = vpack.c.b16 %v1464, %v1464
      %v1529 = vpack.c.b16 %v1465, %v1465
      %v1530 = vpack.c.b16 %v1466, %v1466
      %v1531 = vpack.c.b16 %v1467, %v1467
      %v1532 = vpack.c.b16 %v1468, %v1468
      %v1533 = vpack.c.b16 %v1469, %v1469
      %v1534 = vpack.c.b16 %v1470, %v1470
      %v1535 = vpack.c.b16 %v1471, %v1471
      %v1536 = vpack.c.b16 %v1472, %v1472
      %v1537 = vpack.c.b16 %v1473, %v1473
      %v1538 = vpack.c.b16 %v1474, %v1474
      %v1539 = vpack.c.b16 %v1475, %v1475
      %v1540 = vpack.c.b16 %v1476, %v1476
      %v1541 = vpack.c.b16 %v1477, %v1477
      %v1542 = vpack.c.b16 %v1478, %v1478
      %v1543 = vpack.c.b16 %v1479, %v1479
      %v1544 = vpack.c.b16 %v1480, %v1480
      %v1545 = vpack.c.b16 %v1481, %v1481
      %v1546 = vpack.c.b16 %v1482, %v1482
      %v1547 = vpack.c.b16 %v1483, %v1483
      %v1548 = vpack.c.b16 %v1484, %v1484
      %v1549 = vpack.c.b16 %v1485, %v1485
      %v1550 = vpack.c.b16 %v1486, %v1486
      %v1551 = vpack.c.b16 %v1487, %v1487
      %v1552 = vpack.c.b16 %v1488, %v1488
      %v1553 = vpack.c.b16 %v1489, %v1489
      %v1554 = vpack.c.b16 %v1490, %v1490
      %v1555 = vpack.c.b16 %v1491, %v1491
      %v1556 = vpack.c.b16 %v1492, %v1492
      %v1557 = vpack.c.b16 %v1493, %v1493
      %v1558 = vpack.c.b16 %v1494, %v1494
      %v1559 = vpack.c.b16 %v1495, %v1495
      %v1560 = vpack.c.b16 %v1496, %v1496
      %v1561 = vpack.c.b16 %v1497, %v1497
      %v1562 = vpack.c.b16 %v1498, %v1498
      %v1563 = vpack.c.b16 %v1499, %v1499
      %v1564 = vpack.c.b16 %v1500, %v1500
      %v1565 = vpack.c.b16 %v1501, %v1501
      %v1566 = vpack.c.b16 %v1502, %v1502
      %vm1631 = vcmask 519168
      %1632 = vst.msk [vmem:[#allocation3] sm:$0xf] %vm1631, %v1503
      %1633 = vst.msk [vmem:[#allocation3 + $0x4] sm:$0xf] %vm1631, %v1504
      %1634 = vst.msk [vmem:[#allocation3 + $0x8] sm:$0xf] %vm1631, %v1505
      %1635 = vst.msk [vmem:[#allocation3 + $0xc] sm:$0xf] %vm1631, %v1506
      %1636 = vst.msk [vmem:[#allocation3 + $0x10] sm:$0xf] %vm1631, %v1507
      %1637 = vst.msk [vmem:[#allocation3 + $0x14] sm:$0xf] %vm1631, %v1508
      %1638 = vst.msk [vmem:[#allocation3 + $0x18] sm:$0xf] %vm1631, %v1509
      %1639 = vst.msk [vmem:[#allocation3 + $0x1c] sm:$0xf] %vm1631, %v1510
      %1640 = vst.msk [vmem:[#allocation3 + $0x20] sm:$0xf] %vm1631, %v1511
      %1641 = vst.msk [vmem:[#allocation3 + $0x24] sm:$0xf] %vm1631, %v1512
      %1642 = vst.msk [vmem:[#allocation3 + $0x28] sm:$0xf] %vm1631, %v1513
      %1643 = vst.msk [vmem:[#allocation3 + $0x2c] sm:$0xf] %vm1631, %v1514
      %1644 = vst.msk [vmem:[#allocation3 + $0x30] sm:$0xf] %vm1631, %v1515
      %1645 = vst.msk [vmem:[#allocation3 + $0x34] sm:$0xf] %vm1631, %v1516
      %1646 = vst.msk [vmem:[#allocation3 + $0x38] sm:$0xf] %vm1631, %v1517
      %1647 = vst.msk [vmem:[#allocation3 + $0x3c] sm:$0xf] %vm1631, %v1518
      %1648 = vst.msk [vmem:[#allocation3 + $0x40] sm:$0xf] %vm1631, %v1519
      %1649 = vst.msk [vmem:[#allocation3 + $0x44] sm:$0xf] %vm1631, %v1520
      %1650 = vst.msk [vmem:[#allocation3 + $0x48] sm:$0xf] %vm1631, %v1521
      %1651 = vst.msk [vmem:[#allocation3 + $0x4c] sm:$0xf] %vm1631, %v1522
      %1652 = vst.msk [vmem:[#allocation3 + $0x50] sm:$0xf] %vm1631, %v1523
      %1653 = vst.msk [vmem:[#allocation3 + $0x54] sm:$0xf] %vm1631, %v1524
      %1654 = vst.msk [vmem:[#allocation3 + $0x58] sm:$0xf] %vm1631, %v1525
      %1655 = vst.msk [vmem:[#allocation3 + $0x5c] sm:$0xf] %vm1631, %v1526
      %1656 = vst.msk [vmem:[#allocation3 + $0x60] sm:$0xf] %vm1631, %v1527
      %1657 = vst.msk [vmem:[#allocation3 + $0x64] sm:$0xf] %vm1631, %v1528
      %1658 = vst.msk [vmem:[#allocation3 + $0x68] sm:$0xf] %vm1631, %v1529
      %1659 = vst.msk [vmem:[#allocation3 + $0x6c] sm:$0xf] %vm1631, %v1530
      %1660 = vst.msk [vmem:[#allocation3 + $0x70] sm:$0xf] %vm1631, %v1531
      %1661 = vst.msk [vmem:[#allocation3 + $0x74] sm:$0xf] %vm1631, %v1532
      %1662 = vst.msk [vmem:[#allocation3 + $0x78] sm:$0xf] %vm1631, %v1533
      %1663 = vst.msk [vmem:[#allocation3 + $0x7c] sm:$0xf] %vm1631, %v1534
      %1664 = vst.msk [vmem:[#allocation3 + $0x80] sm:$0xf] %vm1631, %v1535
      %1665 = vst.msk [vmem:[#allocation3 + $0x84] sm:$0xf] %vm1631, %v1536
      %1666 = vst.msk [vmem:[#allocation3 + $0x88] sm:$0xf] %vm1631, %v1537
      %1667 = vst.msk [vmem:[#allocation3 + $0x8c] sm:$0xf] %vm1631, %v1538
      %1668 = vst.msk [vmem:[#allocation3 + $0x90] sm:$0xf] %vm1631, %v1539
      %1669 = vst.msk [vmem:[#allocation3 + $0x94] sm:$0xf] %vm1631, %v1540
      %1670 = vst.msk [vmem:[#allocation3 + $0x98] sm:$0xf] %vm1631, %v1541
      %1671 = vst.msk [vmem:[#allocation3 + $0x9c] sm:$0xf] %vm1631, %v1542
      %1672 = vst.msk [vmem:[#allocation3 + $0xa0] sm:$0xf] %vm1631, %v1543
      %1673 = vst.msk [vmem:[#allocation3 + $0xa4] sm:$0xf] %vm1631, %v1544
      %1674 = vst.msk [vmem:[#allocation3 + $0xa8] sm:$0xf] %vm1631, %v1545
      %1675 = vst.msk [vmem:[#allocation3 + $0xac] sm:$0xf] %vm1631, %v1546
      %1676 = vst.msk [vmem:[#allocation3 + $0xb0] sm:$0xf] %vm1631, %v1547
      %1677 = vst.msk [vmem:[#allocation3 + $0xb4] sm:$0xf] %vm1631, %v1548
      %1678 = vst.msk [vmem:[#allocation3 + $0xb8] sm:$0xf] %vm1631, %v1549
      %1679 = vst.msk [vmem:[#allocation3 + $0xbc] sm:$0xf] %vm1631, %v1550
      %1680 = vst.msk [vmem:[#allocation3 + $0xc0] sm:$0xf] %vm1631, %v1551
      %1681 = vst.msk [vmem:[#allocation3 + $0xc4] sm:$0xf] %vm1631, %v1552
      %1682 = vst.msk [vmem:[#allocation3 + $0xc8] sm:$0xf] %vm1631, %v1553
      %1683 = vst.msk [vmem:[#allocation3 + $0xcc] sm:$0xf] %vm1631, %v1554
      %1684 = vst.msk [vmem:[#allocation3 + $0xd0] sm:$0xf] %vm1631, %v1555
      %1685 = vst.msk [vmem:[#allocation3 + $0xd4] sm:$0xf] %vm1631, %v1556
      %1686 = vst.msk [vmem:[#allocation3 + $0xd8] sm:$0xf] %vm1631, %v1557
      %1687 = vst.msk [vmem:[#allocation3 + $0xdc] sm:$0xf] %vm1631, %v1558
      %1688 = vst.msk [vmem:[#allocation3 + $0xe0] sm:$0xf] %vm1631, %v1559
      %1689 = vst.msk [vmem:[#allocation3 + $0xe4] sm:$0xf] %vm1631, %v1560
      %1690 = vst.msk [vmem:[#allocation3 + $0xe8] sm:$0xf] %vm1631, %v1561
      %1691 = vst.msk [vmem:[#allocation3 + $0xec] sm:$0xf] %vm1631, %v1562
      %1692 = vst.msk [vmem:[#allocation3 + $0xf0] sm:$0xf] %vm1631, %v1563
      %1693 = vst.msk [vmem:[#allocation3 + $0xf4] sm:$0xf] %vm1631, %v1564
      %1694 = vst.msk [vmem:[#allocation3 + $0xf8] sm:$0xf] %vm1631, %v1565
      %1695 = vst.msk [vmem:[#allocation3 + $0xfc] sm:$0xf] %vm1631, %v1566
    $region25: #{conv2d.1} parent=1 // pred_fallthru
      _
    // Predicated region
    $region26: #{conv2d.1} parent=1 // pred_check
      _
    $region27: #{conv2d.1} parent=1 // pred_check_branch
      %1697 = sbr.rel (0) target = $region29
    $region28: #{conv2d.1} parent=1 // pred_region
      %s1699 = ssub.s32 4096, 4096
      %1700 = vsyncadd [#allocation4], %s1699
      %s1701 = sshll.u32 [#allocation3], 4
      %s1702 = int_to_ptr.vmem [resolvable:$true] %s1701
      %1707 = dma.vmem_to_hbm [thread:$0]  %s1702, 4096, %s4, [#allocation4], 64, 64, 4
    $region29: #{conv2d.1} parent=1 // pred_fallthru
      _
    // Predicated region
    $region30: #{conv2d.1} parent=1 // pred_check
      _
    $region31: #{conv2d.1} parent=1 // pred_check_branch
      %1709 = sbr.rel (0) target = $region33
    $region32: #{conv2d.1} parent=1 // pred_region
      %1710 = dma.done [#allocation4], 4096
    $region33: #{conv2d.1} parent=1 // pred_fallthru
      _
    %1711 = vsyncpa [#allocation4], 1

</llo_original>
